<compile_context>
chip_gen: v7x
topology: tpu7x:2x2x1
jax: 0.10.0
libtpu: 0.0.40
codegen_flags: <defaults>
</compile_context>

<pallas_src>
import math
import jax
import jax.numpy as jnp
from jax.experimental import pallas as pl
from jax.experimental.pallas import tpu as pltpu

# ----- small synthetic config (structure mirrors MiniGPTConfig) -----
SEQ = 8             # visual_encoder_attn_hidden_dim (N)
EMBED = 32          # visual_encoder_embed_dim
HEADS = 4           # visual_encoder_attn_heads
HEAD_DIM = EMBED // HEADS
FC_HIDDEN = 64      # visual_encoder_fc_hidden_dim
EPS = 1e-5          # relax layer_norm default epsilon
SCALE = HEAD_DIM ** (-0.5)
DTYPE = jnp.float32  # config.dtype is float16; use f32 on TPU for numerics

# Row layout of the packed small-vector operand (8, 3*EMBED).
(ROW_N1W, ROW_N1B, ROW_N2W, ROW_N2B,
 ROW_PROJB, ROW_FC2B, ROW_QKVB, ROW_FC1B) = range(8)


def _layer_norm(x, w, b):
    mean = jnp.mean(x, axis=-1, keepdims=True)
    var = jnp.mean((x - mean) ** 2, axis=-1, keepdims=True)
    return (x - mean) * jax.lax.rsqrt(var + EPS) * w + b


def _gelu_exact(x):
    # relax.op.nn.gelu: 0.5 * x * (1 + erf(x / sqrt(2)))
    return 0.5 * x * (1.0 + jax.lax.erf(x * (1.0 / math.sqrt(2.0))))


def encoder_block_kernel(x_ref, vec_ref, wqkv_ref, wproj_ref, wfc1_ref,
                         wfc2_ref, o_ref, head_buf):
    x = x_ref[...]                                            # (SEQ, EMBED)

    # ---------------- LayerNorm 1 ----------------
    xn = _layer_norm(x,
                     vec_ref[ROW_N1W:ROW_N1W + 1, :EMBED],
                     vec_ref[ROW_N1B:ROW_N1B + 1, :EMBED])

    # ---------------- fused QKV projection ----------------
    # Weight is pre-transposed host-side; attention scale already folded into
    # the Q columns and the q bias (K bias is zero as in the reference).
    qkv = jnp.dot(xn, wqkv_ref[...], preferred_element_type=jnp.float32)
    qkv = qkv + vec_ref[ROW_QKVB:ROW_QKVB + 1, :]             # (SEQ, 3*EMBED)

    # ---------------- multi-head attention ----------------
    # Each head's output is written into a VMEM concat buffer so the output
    # projection is a single (SEQ,E)x(E,E) matmul after the loop.
    for h in range(HEADS):
        lo = h * HEAD_DIM
        q = qkv[:, lo:lo + HEAD_DIM]                          # scale pre-folded
        k = qkv[:, EMBED + lo:EMBED + lo + HEAD_DIM]
        v = qkv[:, 2 * EMBED + lo:2 * EMBED + lo + HEAD_DIM]
        s = jnp.einsum('qd,kd->qk', q, k,
                       preferred_element_type=jnp.float32)    # (SEQ, SEQ)
        s = s - jnp.max(s, axis=-1, keepdims=True)
        p = jnp.exp(s)
        p = p * pl.reciprocal(jnp.sum(p, axis=-1, keepdims=True), approx=True)
        head_buf[:, lo:lo + HEAD_DIM] = jnp.dot(
            p, v, preferred_element_type=jnp.float32)

    proj = jnp.dot(head_buf[...], wproj_ref[...],
                   preferred_element_type=jnp.float32)
    proj = proj + vec_ref[ROW_PROJB:ROW_PROJB + 1, :EMBED]

    # first residual (residual is the ORIGINAL block input, pre-norm)
    y = x + proj

    # ---------------- LayerNorm 2 + MLP ----------------
    yn = _layer_norm(y,
                     vec_ref[ROW_N2W:ROW_N2W + 1, :EMBED],
                     vec_ref[ROW_N2B:ROW_N2B + 1, :EMBED])
    h1 = jnp.dot(yn, wfc1_ref[...], preferred_element_type=jnp.float32)
    h1 = _gelu_exact(h1 + vec_ref[ROW_FC1B:ROW_FC1B + 1, :FC_HIDDEN])
    h2 = jnp.dot(h1, wfc2_ref[...], preferred_element_type=jnp.float32)
    h2 = h2 + vec_ref[ROW_FC2B:ROW_FC2B + 1, :EMBED]

    o_ref[...] = (y + h2).astype(o_ref.dtype)


def prepare_kernel_params(params):
    """One-time host-side repacking: pre-transpose weights, fold the attention
    scale, build the fused qkv bias, and pack all small 1-D vectors into a
    single (8, 3*EMBED) operand (one DMA instead of eight)."""
    wqkv_t = params["qkv_weight"].T.astype(jnp.float32)        # (E, 3E)
    scale_cols = jnp.concatenate([
        jnp.full((EMBED,), SCALE, jnp.float32),
        jnp.ones((2 * EMBED,), jnp.float32)], axis=0)
    wqkv_t = wqkv_t * scale_cols[None, :]                      # fold q scale

    qkv_bias = jnp.concatenate([
        params["q_bias"].astype(jnp.float32) * SCALE,
        jnp.zeros((EMBED,), jnp.float32),                      # K bias == 0
        params["v_bias"].astype(jnp.float32)], axis=0)         # (3E,)

    def row(v):
        v = v.astype(jnp.float32)
        return jnp.pad(v, (0, 3 * EMBED - v.shape[0]))

    vec = jnp.stack([
        row(params["norm1_weight"]), row(params["norm1_bias"]),
        row(params["norm2_weight"]), row(params["norm2_bias"]),
        row(params["proj_bias"]), row(params["fc2_bias"]),
        qkv_bias, row(params["fc1_bias"])], axis=0)            # (8, 3E)

    return {
        "vec": vec,
        "wqkv": wqkv_t,                                        # (E, 3E)
        "wproj": params["proj_weight"].T.astype(jnp.float32),  # (E, E)
        "wfc1": params["fc1_weight"].T.astype(jnp.float32),    # (E, F)
        "wfc2": params["fc2_weight"].T.astype(jnp.float32),    # (F, E)
    }


def minigpt_visual_encoder_block(x, kparams):
    """x: (1, SEQ, EMBED) -> (1, SEQ, EMBED). kparams from prepare_kernel_params."""
    x2d = x[0].astype(jnp.float32)
    inputs = [x2d, kparams["vec"], kparams["wqkv"], kparams["wproj"],
              kparams["wfc1"], kparams["wfc2"]]

    flops = (2 * SEQ * EMBED * (3 * EMBED)            # qkv
             + HEADS * 4 * SEQ * SEQ * HEAD_DIM       # qk^T + pv
             + 2 * SEQ * EMBED * EMBED                # proj
             + 4 * SEQ * EMBED * FC_HIDDEN)           # fc1 + fc2
    transcendentals = (HEADS * SEQ * SEQ              # exp
                       + SEQ * FC_HIDDEN              # erf
                       + HEADS * SEQ                  # softmax reciprocal
                       + 2 * SEQ)                     # LN rsqrt
    bytes_accessed = (sum(int(a.size) * a.dtype.itemsize for a in inputs)
                      + SEQ * EMBED * 4)

    out = pl.pallas_call(
        encoder_block_kernel,
        out_shape=jax.ShapeDtypeStruct((SEQ, EMBED), jnp.float32),
        in_specs=[pl.BlockSpec(memory_space=pltpu.MemorySpace.VMEM)] * len(inputs),
        out_specs=pl.BlockSpec(memory_space=pltpu.MemorySpace.VMEM),
        scratch_shapes=[pltpu.VMEM((SEQ, EMBED), jnp.float32)],  # head concat buf
        cost_estimate=pl.CostEstimate(flops=flops,
                                      transcendentals=transcendentals,
                                      bytes_accessed=bytes_accessed),
    )(*inputs)
    return out[None].astype(x.dtype)


# ---------------- pure-JAX reference (for correctness check) ----------------
def reference_block(x, params):
    x2d = x[0]
    xn = _layer_norm(x2d, params["norm1_weight"], params["norm1_bias"])
    qkv_bias = jnp.concatenate(
        [params["q_bias"], jnp.zeros((EMBED,), x.dtype), params["v_bias"]], axis=0)
    qkv = xn @ params["qkv_weight"].T + qkv_bias
    qkv = qkv.reshape(SEQ, 3, HEADS, HEAD_DIM).transpose(1, 2, 0, 3)  # (3,H,N,hd)
    q, k, v = qkv[0] * SCALE, qkv[1], qkv[2]
    attn = jax.nn.softmax(jnp.einsum("hnd,hmd->hnm", q, k), axis=-1)
    o = jnp.einsum("hnm,hmd->hnd", attn, v).transpose(1, 0, 2).reshape(SEQ, EMBED)
    proj = o @ params["proj_weight"].T + params["proj_bias"]
    y = x2d + proj
    yn = _layer_norm(y, params["norm2_weight"], params["norm2_bias"])
    h1 = _gelu_exact(yn @ params["fc1_weight"].T + params["fc1_bias"])
    h2 = h1 @ params["fc2_weight"].T + params["fc2_bias"]
    return (y + h2)[None]


def init_params(key):
    ks = jax.random.split(key, 12)
    s = 0.05
    return {
        "norm1_weight": jnp.ones((EMBED,), DTYPE),
        "norm1_bias": jnp.zeros((EMBED,), DTYPE),
        "q_bias": s * jax.random.normal(ks[0], (EMBED,), DTYPE),
        "v_bias": s * jax.random.normal(ks[1], (EMBED,), DTYPE),
        "qkv_weight": s * jax.random.normal(ks[2], (3 * EMBED, EMBED), DTYPE),
        "proj_weight": s * jax.random.normal(ks[3], (EMBED, EMBED), DTYPE),
        "proj_bias": s * jax.random.normal(ks[4], (EMBED,), DTYPE),
        "norm2_weight": jnp.ones((EMBED,), DTYPE),
        "norm2_bias": jnp.zeros((EMBED,), DTYPE),
        "fc1_weight": s * jax.random.normal(ks[5], (FC_HIDDEN, EMBED), DTYPE),
        "fc1_bias": s * jax.random.normal(ks[6], (FC_HIDDEN,), DTYPE),
        "fc2_weight": s * jax.random.normal(ks[7], (EMBED, FC_HIDDEN), DTYPE),
        "fc2_bias": s * jax.random.normal(ks[8], (EMBED,), DTYPE),
    }


if __name__ == "__main__":
    key = jax.random.PRNGKey(0)
    pkey, xkey = jax.random.split(key)
    params = init_params(pkey)
    kparams = prepare_kernel_params(params)            # one-time host-side prep
    x = jax.random.normal(xkey, (1, SEQ, EMBED), DTYPE)  # bs=1 (hard-coded in module)

    out = jax.block_until_ready(minigpt_visual_encoder_block(x, kparams))
    ref = jax.block_until_ready(reference_block(x, params))

    assert out.shape == (1, SEQ, EMBED) and out.dtype == DTYPE
    # Tolerance slightly looser than before: the kernel uses the approximate
    # (EUP) reciprocal for softmax normalization.
    assert jnp.allclose(out, ref, rtol=2e-3, atol=2e-3), (
        f"max abs err {jnp.max(jnp.abs(out - ref))}")
    print("KERNEL_OK")
</pallas_src>

<mosaic_0001>
module attributes {stable_mosaic.version = 11 : i64} {
  func.func @encoder_block_kernel(%arg0: memref<8x32xf32, #tpu.memory_space<vmem>>, %arg1: memref<8x96xf32, #tpu.memory_space<vmem>>, %arg2: memref<32x96xf32, #tpu.memory_space<vmem>>, %arg3: memref<32x32xf32, #tpu.memory_space<vmem>>, %arg4: memref<32x64xf32, #tpu.memory_space<vmem>>, %arg5: memref<64x32xf32, #tpu.memory_space<vmem>>, %arg6: memref<8x32xf32, #tpu.memory_space<vmem>>, %arg7: memref<8x32xf32, #tpu.memory_space<vmem>>) attributes {dimension_semantics = [], scalar_prefetch = 0 : i64, scratch_operands = 1 : i64, tpu.core_type = #tpu.core_type<tc>} {
    %c0 = arith.constant 0 : index
    %c0_0 = arith.constant 0 : index
    %0 = vector.load %arg0[%c0, %c0_0] : memref<8x32xf32, #tpu.memory_space<vmem>>, vector<8x32xf32>
    %c0_1 = arith.constant 0 : index
    %c0_2 = arith.constant 0 : index
    %1 = vector.load %arg1[%c0_1, %c0_2] : memref<8x96xf32, #tpu.memory_space<vmem>>, vector<1x32xf32>
    %c1 = arith.constant 1 : index
    %c0_3 = arith.constant 0 : index
    %2 = vector.load %arg1[%c1, %c0_3] : memref<8x96xf32, #tpu.memory_space<vmem>>, vector<1x32xf32>
    %cst = arith.constant dense<0.000000e+00> : vector<8xf32>
    %3 = vector.multi_reduction <add>, %0, %cst [1] : vector<8x32xf32> to vector<8xf32>
    %4 = vector.shape_cast %3 : vector<8xf32> to vector<8x1xf32>
    %cst_4 = arith.constant 3.200000e+01 : f32
    %5 = vector.broadcast %cst_4 : f32 to vector<8x1xf32>
    %6 = arith.divf %4, %5 : vector<8x1xf32>
    %7 = vector.broadcast %6 : vector<8x1xf32> to vector<8x32xf32>
    %8 = arith.subf %0, %7 : vector<8x32xf32>
    %9 = arith.mulf %8, %8 : vector<8x32xf32>
    %cst_5 = arith.constant dense<0.000000e+00> : vector<8xf32>
    %10 = vector.multi_reduction <add>, %9, %cst_5 [1] : vector<8x32xf32> to vector<8xf32>
    %11 = vector.shape_cast %10 : vector<8xf32> to vector<8x1xf32>
    %cst_6 = arith.constant 3.200000e+01 : f32
    %12 = vector.broadcast %cst_6 : f32 to vector<8x1xf32>
    %13 = arith.divf %11, %12 : vector<8x1xf32>
    %14 = vector.broadcast %6 : vector<8x1xf32> to vector<8x32xf32>
    %15 = arith.subf %0, %14 : vector<8x32xf32>
    %cst_7 = arith.constant 9.99999974E-6 : f32
    %16 = vector.broadcast %cst_7 : f32 to vector<8x1xf32>
    %17 = arith.addf %13, %16 : vector<8x1xf32>
    %18 = math.rsqrt %17 : vector<8x1xf32>
    %19 = vector.broadcast %18 : vector<8x1xf32> to vector<8x32xf32>
    %20 = arith.mulf %15, %19 : vector<8x32xf32>
    %21 = vector.broadcast %1 : vector<1x32xf32> to vector<8x32xf32>
    %22 = arith.mulf %20, %21 : vector<8x32xf32>
    %23 = vector.broadcast %2 : vector<1x32xf32> to vector<8x32xf32>
    %24 = arith.addf %22, %23 : vector<8x32xf32>
    %c0_8 = arith.constant 0 : index
    %c0_9 = arith.constant 0 : index
    %25 = vector.load %arg2[%c0_8, %c0_9] : memref<32x96xf32, #tpu.memory_space<vmem>>, vector<32x96xf32>
    %cst_10 = arith.constant dense<0.000000e+00> : vector<8x96xf32>
    %26 = tpu.matmul %24, %25, %cst_10 {dimension_numbers = #tpu.dot_dimension_numbers<[1], [0], [0], [1], [0, 0, 1, 1], [], []>} : vector<8x32xf32>, vector<32x96xf32>, vector<8x96xf32> -> vector<8x96xf32>
    %c6 = arith.constant 6 : index
    %c0_11 = arith.constant 0 : index
    %27 = vector.load %arg1[%c6, %c0_11] : memref<8x96xf32, #tpu.memory_space<vmem>>, vector<1x96xf32>
    %28 = vector.broadcast %27 : vector<1x96xf32> to vector<8x96xf32>
    %29 = arith.addf %26, %28 : vector<8x96xf32>
    %30 = vector.extract_strided_slice %29 {offsets = [0, 0], sizes = [8, 8], strides = [1, 1]} : vector<8x96xf32> to vector<8x8xf32>
    %31 = vector.extract_strided_slice %29 {offsets = [0, 32], sizes = [8, 8], strides = [1, 1]} : vector<8x96xf32> to vector<8x8xf32>
    %32 = vector.extract_strided_slice %29 {offsets = [0, 64], sizes = [8, 8], strides = [1, 1]} : vector<8x96xf32> to vector<8x8xf32>
    "tpu.trace_start"() <{level = 10 : i32, message = "qd,kd->qk"}> : () -> ()
    %cst_12 = arith.constant dense<0.000000e+00> : vector<8x8xf32>
    %33 = tpu.matmul %30, %31, %cst_12 {dimension_numbers = #tpu.dot_dimension_numbers<[1], [1], [0], [0], [0, 0, 1, 0], [], []>} : vector<8x8xf32>, vector<8x8xf32>, vector<8x8xf32> -> vector<8x8xf32>
    "tpu.trace_stop"() : () -> ()
    %cst_13 = arith.constant dense<0xFF800000> : vector<8xf32>
    %34 = vector.multi_reduction <maximumf>, %33, %cst_13 [1] : vector<8x8xf32> to vector<8xf32>
    %35 = vector.shape_cast %34 : vector<8xf32> to vector<8x1xf32>
    %36 = vector.broadcast %35 : vector<8x1xf32> to vector<8x8xf32>
    %37 = arith.subf %33, %36 : vector<8x8xf32>
    %38 = math.exp %37 : vector<8x8xf32>
    %cst_14 = arith.constant dense<0.000000e+00> : vector<8xf32>
    %39 = vector.multi_reduction <add>, %38, %cst_14 [1] : vector<8x8xf32> to vector<8xf32>
    %40 = vector.shape_cast %39 : vector<8xf32> to vector<8x1xf32>
    %41 = tpu.reciprocal %40 {approx = true} : vector<8x1xf32> -> vector<8x1xf32>
    %42 = vector.broadcast %41 : vector<8x1xf32> to vector<8x8xf32>
    %43 = arith.mulf %38, %42 : vector<8x8xf32>
    %cst_15 = arith.constant dense<0.000000e+00> : vector<8x8xf32>
    %44 = tpu.matmul %43, %32, %cst_15 {dimension_numbers = #tpu.dot_dimension_numbers<[1], [0], [0], [1], [0, 0, 1, 1], [], []>} : vector<8x8xf32>, vector<8x8xf32>, vector<8x8xf32> -> vector<8x8xf32>
    %c0_16 = arith.constant 0 : index
    %c0_17 = arith.constant 0 : index
    %45 = vector.load %arg7[%c0_16, %c0_17] : memref<8x32xf32, #tpu.memory_space<vmem>>, vector<8x8xf32>
    tpu.vector_store %arg7[%c0_16, %c0_17], %44 {strides = array<i32>} : memref<8x32xf32, #tpu.memory_space<vmem>>, vector<8x8xf32>,
    %46 = vector.extract_strided_slice %29 {offsets = [0, 8], sizes = [8, 8], strides = [1, 1]} : vector<8x96xf32> to vector<8x8xf32>
    %47 = vector.extract_strided_slice %29 {offsets = [0, 40], sizes = [8, 8], strides = [1, 1]} : vector<8x96xf32> to vector<8x8xf32>
    %48 = vector.extract_strided_slice %29 {offsets = [0, 72], sizes = [8, 8], strides = [1, 1]} : vector<8x96xf32> to vector<8x8xf32>
    "tpu.trace_start"() <{level = 10 : i32, message = "qd,kd->qk"}> : () -> ()
    %cst_18 = arith.constant dense<0.000000e+00> : vector<8x8xf32>
    %49 = tpu.matmul %46, %47, %cst_18 {dimension_numbers = #tpu.dot_dimension_numbers<[1], [1], [0], [0], [0, 0, 1, 0], [], []>} : vector<8x8xf32>, vector<8x8xf32>, vector<8x8xf32> -> vector<8x8xf32>
    "tpu.trace_stop"() : () -> ()
    %cst_19 = arith.constant dense<0xFF800000> : vector<8xf32>
    %50 = vector.multi_reduction <maximumf>, %49, %cst_19 [1] : vector<8x8xf32> to vector<8xf32>
    %51 = vector.shape_cast %50 : vector<8xf32> to vector<8x1xf32>
    %52 = vector.broadcast %51 : vector<8x1xf32> to vector<8x8xf32>
    %53 = arith.subf %49, %52 : vector<8x8xf32>
    %54 = math.exp %53 : vector<8x8xf32>
    %cst_20 = arith.constant dense<0.000000e+00> : vector<8xf32>
    %55 = vector.multi_reduction <add>, %54, %cst_20 [1] : vector<8x8xf32> to vector<8xf32>
    %56 = vector.shape_cast %55 : vector<8xf32> to vector<8x1xf32>
    %57 = tpu.reciprocal %56 {approx = true} : vector<8x1xf32> -> vector<8x1xf32>
    %58 = vector.broadcast %57 : vector<8x1xf32> to vector<8x8xf32>
    %59 = arith.mulf %54, %58 : vector<8x8xf32>
    %cst_21 = arith.constant dense<0.000000e+00> : vector<8x8xf32>
    %60 = tpu.matmul %59, %48, %cst_21 {dimension_numbers = #tpu.dot_dimension_numbers<[1], [0], [0], [1], [0, 0, 1, 1], [], []>} : vector<8x8xf32>, vector<8x8xf32>, vector<8x8xf32> -> vector<8x8xf32>
    %c0_22 = arith.constant 0 : index
    %c8 = arith.constant 8 : index
    %61 = vector.load %arg7[%c0_22, %c8] : memref<8x32xf32, #tpu.memory_space<vmem>>, vector<8x8xf32>
    tpu.vector_store %arg7[%c0_22, %c8], %60 {strides = array<i32>} : memref<8x32xf32, #tpu.memory_space<vmem>>, vector<8x8xf32>,
    %62 = vector.extract_strided_slice %29 {offsets = [0, 16], sizes = [8, 8], strides = [1, 1]} : vector<8x96xf32> to vector<8x8xf32>
    %63 = vector.extract_strided_slice %29 {offsets = [0, 48], sizes = [8, 8], strides = [1, 1]} : vector<8x96xf32> to vector<8x8xf32>
    %64 = vector.extract_strided_slice %29 {offsets = [0, 80], sizes = [8, 8], strides = [1, 1]} : vector<8x96xf32> to vector<8x8xf32>
    "tpu.trace_start"() <{level = 10 : i32, message = "qd,kd->qk"}> : () -> ()
    %cst_23 = arith.constant dense<0.000000e+00> : vector<8x8xf32>
    %65 = tpu.matmul %62, %63, %cst_23 {dimension_numbers = #tpu.dot_dimension_numbers<[1], [1], [0], [0], [0, 0, 1, 0], [], []>} : vector<8x8xf32>, vector<8x8xf32>, vector<8x8xf32> -> vector<8x8xf32>
    "tpu.trace_stop"() : () -> ()
    %cst_24 = arith.constant dense<0xFF800000> : vector<8xf32>
    %66 = vector.multi_reduction <maximumf>, %65, %cst_24 [1] : vector<8x8xf32> to vector<8xf32>
    %67 = vector.shape_cast %66 : vector<8xf32> to vector<8x1xf32>
    %68 = vector.broadcast %67 : vector<8x1xf32> to vector<8x8xf32>
    %69 = arith.subf %65, %68 : vector<8x8xf32>
    %70 = math.exp %69 : vector<8x8xf32>
    %cst_25 = arith.constant dense<0.000000e+00> : vector<8xf32>
    %71 = vector.multi_reduction <add>, %70, %cst_25 [1] : vector<8x8xf32> to vector<8xf32>
    %72 = vector.shape_cast %71 : vector<8xf32> to vector<8x1xf32>
    %73 = tpu.reciprocal %72 {approx = true} : vector<8x1xf32> -> vector<8x1xf32>
    %74 = vector.broadcast %73 : vector<8x1xf32> to vector<8x8xf32>
    %75 = arith.mulf %70, %74 : vector<8x8xf32>
    %cst_26 = arith.constant dense<0.000000e+00> : vector<8x8xf32>
    %76 = tpu.matmul %75, %64, %cst_26 {dimension_numbers = #tpu.dot_dimension_numbers<[1], [0], [0], [1], [0, 0, 1, 1], [], []>} : vector<8x8xf32>, vector<8x8xf32>, vector<8x8xf32> -> vector<8x8xf32>
    %c0_27 = arith.constant 0 : index
    %c16 = arith.constant 16 : index
    %77 = vector.load %arg7[%c0_27, %c16] : memref<8x32xf32, #tpu.memory_space<vmem>>, vector<8x8xf32>
    tpu.vector_store %arg7[%c0_27, %c16], %76 {strides = array<i32>} : memref<8x32xf32, #tpu.memory_space<vmem>>, vector<8x8xf32>,
    %78 = vector.extract_strided_slice %29 {offsets = [0, 24], sizes = [8, 8], strides = [1, 1]} : vector<8x96xf32> to vector<8x8xf32>
    %79 = vector.extract_strided_slice %29 {offsets = [0, 56], sizes = [8, 8], strides = [1, 1]} : vector<8x96xf32> to vector<8x8xf32>
    %80 = vector.extract_strided_slice %29 {offsets = [0, 88], sizes = [8, 8], strides = [1, 1]} : vector<8x96xf32> to vector<8x8xf32>
    "tpu.trace_start"() <{level = 10 : i32, message = "qd,kd->qk"}> : () -> ()
    %cst_28 = arith.constant dense<0.000000e+00> : vector<8x8xf32>
    %81 = tpu.matmul %78, %79, %cst_28 {dimension_numbers = #tpu.dot_dimension_numbers<[1], [1], [0], [0], [0, 0, 1, 0], [], []>} : vector<8x8xf32>, vector<8x8xf32>, vector<8x8xf32> -> vector<8x8xf32>
    "tpu.trace_stop"() : () -> ()
    %cst_29 = arith.constant dense<0xFF800000> : vector<8xf32>
    %82 = vector.multi_reduction <maximumf>, %81, %cst_29 [1] : vector<8x8xf32> to vector<8xf32>
    %83 = vector.shape_cast %82 : vector<8xf32> to vector<8x1xf32>
    %84 = vector.broadcast %83 : vector<8x1xf32> to vector<8x8xf32>
    %85 = arith.subf %81, %84 : vector<8x8xf32>
    %86 = math.exp %85 : vector<8x8xf32>
    %cst_30 = arith.constant dense<0.000000e+00> : vector<8xf32>
    %87 = vector.multi_reduction <add>, %86, %cst_30 [1] : vector<8x8xf32> to vector<8xf32>
    %88 = vector.shape_cast %87 : vector<8xf32> to vector<8x1xf32>
    %89 = tpu.reciprocal %88 {approx = true} : vector<8x1xf32> -> vector<8x1xf32>
    %90 = vector.broadcast %89 : vector<8x1xf32> to vector<8x8xf32>
    %91 = arith.mulf %86, %90 : vector<8x8xf32>
    %cst_31 = arith.constant dense<0.000000e+00> : vector<8x8xf32>
    %92 = tpu.matmul %91, %80, %cst_31 {dimension_numbers = #tpu.dot_dimension_numbers<[1], [0], [0], [1], [0, 0, 1, 1], [], []>} : vector<8x8xf32>, vector<8x8xf32>, vector<8x8xf32> -> vector<8x8xf32>
    %c0_32 = arith.constant 0 : index
    %c24 = arith.constant 24 : index
    %93 = vector.load %arg7[%c0_32, %c24] : memref<8x32xf32, #tpu.memory_space<vmem>>, vector<8x8xf32>
    tpu.vector_store %arg7[%c0_32, %c24], %92 {strides = array<i32>} : memref<8x32xf32, #tpu.memory_space<vmem>>, vector<8x8xf32>,
    %c0_33 = arith.constant 0 : index
    %c0_34 = arith.constant 0 : index
    %94 = vector.load %arg7[%c0_33, %c0_34] : memref<8x32xf32, #tpu.memory_space<vmem>>, vector<8x32xf32>
    %c0_35 = arith.constant 0 : index
    %c0_36 = arith.constant 0 : index
    %95 = vector.load %arg3[%c0_35, %c0_36] : memref<32x32xf32, #tpu.memory_space<vmem>>, vector<32x32xf32>
    %cst_37 = arith.constant dense<0.000000e+00> : vector<8x32xf32>
    %96 = tpu.matmul %94, %95, %cst_37 {dimension_numbers = #tpu.dot_dimension_numbers<[1], [0], [0], [1], [0, 0, 1, 1], [], []>} : vector<8x32xf32>, vector<32x32xf32>, vector<8x32xf32> -> vector<8x32xf32>
    %c4 = arith.constant 4 : index
    %c0_38 = arith.constant 0 : index
    %97 = vector.load %arg1[%c4, %c0_38] : memref<8x96xf32, #tpu.memory_space<vmem>>, vector<1x32xf32>
    %98 = vector.broadcast %97 : vector<1x32xf32> to vector<8x32xf32>
    %99 = arith.addf %96, %98 : vector<8x32xf32>
    %100 = arith.addf %0, %99 : vector<8x32xf32>
    %c2 = arith.constant 2 : index
    %c0_39 = arith.constant 0 : index
    %101 = vector.load %arg1[%c2, %c0_39] : memref<8x96xf32, #tpu.memory_space<vmem>>, vector<1x32xf32>
    %c3 = arith.constant 3 : index
    %c0_40 = arith.constant 0 : index
    %102 = vector.load %arg1[%c3, %c0_40] : memref<8x96xf32, #tpu.memory_space<vmem>>, vector<1x32xf32>
    %cst_41 = arith.constant dense<0.000000e+00> : vector<8xf32>
    %103 = vector.multi_reduction <add>, %100, %cst_41 [1] : vector<8x32xf32> to vector<8xf32>
    %104 = vector.shape_cast %103 : vector<8xf32> to vector<8x1xf32>
    %cst_42 = arith.constant 3.200000e+01 : f32
    %105 = vector.broadcast %cst_42 : f32 to vector<8x1xf32>
    %106 = arith.divf %104, %105 : vector<8x1xf32>
    %107 = vector.broadcast %106 : vector<8x1xf32> to vector<8x32xf32>
    %108 = arith.subf %100, %107 : vector<8x32xf32>
    %109 = arith.mulf %108, %108 : vector<8x32xf32>
    %cst_43 = arith.constant dense<0.000000e+00> : vector<8xf32>
    %110 = vector.multi_reduction <add>, %109, %cst_43 [1] : vector<8x32xf32> to vector<8xf32>
    %111 = vector.shape_cast %110 : vector<8xf32> to vector<8x1xf32>
    %cst_44 = arith.constant 3.200000e+01 : f32
    %112 = vector.broadcast %cst_44 : f32 to vector<8x1xf32>
    %113 = arith.divf %111, %112 : vector<8x1xf32>
    %114 = vector.broadcast %106 : vector<8x1xf32> to vector<8x32xf32>
    %115 = arith.subf %100, %114 : vector<8x32xf32>
    %cst_45 = arith.constant 9.99999974E-6 : f32
    %116 = vector.broadcast %cst_45 : f32 to vector<8x1xf32>
    %117 = arith.addf %113, %116 : vector<8x1xf32>
    %118 = math.rsqrt %117 : vector<8x1xf32>
    %119 = vector.broadcast %118 : vector<8x1xf32> to vector<8x32xf32>
    %120 = arith.mulf %115, %119 : vector<8x32xf32>
    %121 = vector.broadcast %101 : vector<1x32xf32> to vector<8x32xf32>
    %122 = arith.mulf %120, %121 : vector<8x32xf32>
    %123 = vector.broadcast %102 : vector<1x32xf32> to vector<8x32xf32>
    %124 = arith.addf %122, %123 : vector<8x32xf32>
    %c0_46 = arith.constant 0 : index
    %c0_47 = arith.constant 0 : index
    %125 = vector.load %arg4[%c0_46, %c0_47] : memref<32x64xf32, #tpu.memory_space<vmem>>, vector<32x64xf32>
    %cst_48 = arith.constant dense<0.000000e+00> : vector<8x64xf32>
    %126 = tpu.matmul %124, %125, %cst_48 {dimension_numbers = #tpu.dot_dimension_numbers<[1], [0], [0], [1], [0, 0, 1, 1], [], []>} : vector<8x32xf32>, vector<32x64xf32>, vector<8x64xf32> -> vector<8x64xf32>
    %c7 = arith.constant 7 : index
    %c0_49 = arith.constant 0 : index
    %127 = vector.load %arg1[%c7, %c0_49] : memref<8x96xf32, #tpu.memory_space<vmem>>, vector<1x64xf32>
    %128 = vector.broadcast %127 : vector<1x64xf32> to vector<8x64xf32>
    %129 = arith.addf %126, %128 : vector<8x64xf32>
    %cst_50 = arith.constant 5.000000e-01 : f32
    %130 = vector.broadcast %cst_50 : f32 to vector<8x64xf32>
    %131 = arith.mulf %130, %129 : vector<8x64xf32>
    %cst_51 = arith.constant 0.707106769 : f32
    %132 = vector.broadcast %cst_51 : f32 to vector<8x64xf32>
    %133 = arith.mulf %129, %132 : vector<8x64xf32>
    %134 = math.erf %133 : vector<8x64xf32>
    %cst_52 = arith.constant 1.000000e+00 : f32
    %135 = vector.broadcast %cst_52 : f32 to vector<8x64xf32>
    %136 = arith.addf %135, %134 : vector<8x64xf32>
    %137 = arith.mulf %131, %136 : vector<8x64xf32>
    %c0_53 = arith.constant 0 : index
    %c0_54 = arith.constant 0 : index
    %138 = vector.load %arg5[%c0_53, %c0_54] : memref<64x32xf32, #tpu.memory_space<vmem>>, vector<64x32xf32>
    %cst_55 = arith.constant dense<0.000000e+00> : vector<8x32xf32>
    %139 = tpu.matmul %137, %138, %cst_55 {dimension_numbers = #tpu.dot_dimension_numbers<[1], [0], [0], [1], [0, 0, 1, 1], [], []>} : vector<8x64xf32>, vector<64x32xf32>, vector<8x32xf32> -> vector<8x32xf32>
    %c5 = arith.constant 5 : index
    %c0_56 = arith.constant 0 : index
    %140 = vector.load %arg1[%c5, %c0_56] : memref<8x96xf32, #tpu.memory_space<vmem>>, vector<1x32xf32>
    %141 = vector.broadcast %140 : vector<1x32xf32> to vector<8x32xf32>
    %142 = arith.addf %139, %141 : vector<8x32xf32>
    %143 = arith.addf %100, %142 : vector<8x32xf32>
    %c0_57 = arith.constant 0 : index
    %c0_58 = arith.constant 0 : index
    %144 = vector.load %arg6[%c0_57, %c0_58] : memref<8x32xf32, #tpu.memory_space<vmem>>, vector<8x32xf32>
    tpu.vector_store %arg6[%c0_57, %c0_58], %143 {strides = array<i32>} : memref<8x32xf32, #tpu.memory_space<vmem>>, vector<8x32xf32>,
    return
  }
}

</mosaic_0001>

<llo_original>
// kernel: tpu_custom_call.1
$region0: #{tpu_custom_call.1}
  #allocation0 [shape = 'u32[]', space=smem, size = 0x4, offset = 0x4, fixed_abs, tag = 'smem constant byte address 0x4 - core index']
  #allocation1 [shape = 'u32[144,128]{1,0:T(1,128)}', space=vmem, size = 0x12000, scoped, tag = 'internal scratch']
  #allocation2 [shape = 'f32[8,32]{1,0:T(8,128)}', space=vmem, size = 0x1000, scoped, tag = 'scratch operand']
  %s0 = inlined_call_operand.hbm [shape: f32[8,32], index: 0, kind: input, shape index: {}]
  %s1 = inlined_call_operand.hbm [shape: f32[8,96], index: 1, kind: input, shape index: {}]
  %s2 = inlined_call_operand.vmem [shape: f32[32,96], index: 2, kind: input, shape index: {}]
  %s3 = inlined_call_operand.vmem [shape: f32[32,32], index: 3, kind: input, shape index: {}]
  %s4 = inlined_call_operand.vmem [shape: f32[32,64], index: 4, kind: input, shape index: {}]
  %s5 = inlined_call_operand.vmem [shape: f32[64,32], index: 5, kind: input, shape index: {}]
  %s6 = inlined_call_operand.hbm [shape: f32[8,32], index: 6, kind: output, shape index: {}]
  %s7 = sld [smem:[#allocation0]]
  $region42: #{tpu_custom_call.1} parent=0
    _
  %s9 = ssub.s32 1, %s7
  %s10 = scalar_select 0, %s9, %s7
  $region1: #{tpu_custom_call.1} parent=0
    #allocation3 [shape = 'u8[4096]{0}', space=vmem, size = 0x1000, scoped, tag = 'input window, operand 0, single buffered']
    #allocation4 [shape = 's32[1]{0}', space=sflag, size = 0x4, scoped, tag = 'scoped memory for tpu_custom_call.1']
    #allocation5 [shape = 's32[1]{0}', space=sflag, size = 0x4, scoped, tag = 'scoped memory for tpu_custom_call.1']
    #allocation6 [shape = 'u8[4096]{0}', space=vmem, size = 0x1000, scoped, tag = 'input window, operand 1, single buffered']
    #allocation7 [shape = 's32[1]{0}', space=sflag, size = 0x4, scoped, tag = 'scoped memory for tpu_custom_call.1']
    #allocation8 [shape = 'u8[4096]{0}', space=vmem, size = 0x1000, scoped, tag = 'output window, operand 0, single buffered']
    %11 = vsyncpa [#allocation4], 0
    %12 = vsyncpa [#allocation7], 0
    %13 = vsyncpa [#allocation5], 0
    // Predicated region
    $region2: #{tpu_custom_call.1} parent=1 // pred_check
      _
    $region3: #{tpu_custom_call.1} parent=1 // pred_check_branch
      %15 = sbr.rel (0) target = $region5
    $region4: #{tpu_custom_call.1} parent=1 // pred_region
      %s17 = ssub.s32 128, 128
      %18 = vsyncadd [#allocation4], %s17
      %s20 = sshll.u32 [#allocation3], 4
      %s21 = int_to_ptr.vmem [resolvable:$true] %s20
      %23 = dma.hbm_to_vmem [thread:$0]  %s0, 128, %s21, [#allocation4]
    $region5: #{tpu_custom_call.1} parent=1 // pred_fallthru
      _
    // Predicated region
    $region6: #{tpu_custom_call.1} parent=1 // pred_check
      _
    $region7: #{tpu_custom_call.1} parent=1 // pred_check_branch
      %25 = sbr.rel (0) target = $region9
    $region8: #{tpu_custom_call.1} parent=1 // pred_region
      %s27 = ssub.s32 128, 128
      %28 = vsyncadd [#allocation7], %s27
      %s30 = sshll.u32 [#allocation6], 4
      %s31 = int_to_ptr.vmem [resolvable:$true] %s30
      %33 = dma.hbm_to_vmem [thread:$0]  %s1, 128, %s31, [#allocation7]
    $region9: #{tpu_custom_call.1} parent=1 // pred_fallthru
      _
    // Predicated region
    $region10: #{tpu_custom_call.1} parent=1 // pred_check
      _
    $region11: #{tpu_custom_call.1} parent=1 // pred_check_branch
      %35 = sbr.rel (0) target = $region13
    $region12: #{tpu_custom_call.1} parent=1 // pred_region
      _
    $region13: #{tpu_custom_call.1} parent=1 // pred_fallthru
      _
    // Predicated region
    $region14: #{tpu_custom_call.1} parent=1 // pred_check
      _
    $region15: #{tpu_custom_call.1} parent=1 // pred_check_branch
      %37 = sbr.rel (0) target = $region17
    $region16: #{tpu_custom_call.1} parent=1 // pred_region
      _
    $region17: #{tpu_custom_call.1} parent=1 // pred_fallthru
      _
    // Predicated region
    $region18: #{tpu_custom_call.1} parent=1 // pred_check
      _
    $region19: #{tpu_custom_call.1} parent=1 // pred_check_branch
      %39 = sbr.rel (0) target = $region21
    $region20: #{tpu_custom_call.1} parent=1 // pred_region
      _
    $region21: #{tpu_custom_call.1} parent=1 // pred_fallthru
      _
    // Predicated region
    $region22: #{tpu_custom_call.1} parent=1 // pred_check
      _
    $region23: #{tpu_custom_call.1} parent=1 // pred_check_branch
      %41 = sbr.rel (0) target = $region25
    $region24: #{tpu_custom_call.1} parent=1 // pred_region
      _
    $region25: #{tpu_custom_call.1} parent=1 // pred_fallthru
      _
    // Predicated region
    $region26: #{tpu_custom_call.1} parent=1 // pred_check
      _
    $region27: #{tpu_custom_call.1} parent=1 // pred_check_branch
      %43 = sbr.rel (0) target = $region29
    $region28: #{tpu_custom_call.1} parent=1 // pred_region
      %44 = dma.done [#allocation4], 128
    $region29: #{tpu_custom_call.1} parent=1 // pred_fallthru
      _
    // Predicated region
    $region30: #{tpu_custom_call.1} parent=1 // pred_check
      _
    $region31: #{tpu_custom_call.1} parent=1 // pred_check_branch
      %46 = sbr.rel (0) target = $region33
    $region32: #{tpu_custom_call.1} parent=1 // pred_region
      %47 = dma.done [#allocation7], 128
    $region33: #{tpu_custom_call.1} parent=1 // pred_fallthru
      _
    %v48 = vld [vmem:[#allocation3] sm:$0xff]
    %v49 = vld [vmem:[#allocation6] sm:$0x1]
    %v50 = vld [vmem:[#allocation6 + $0x1] sm:$0x1]
    %vm51 = vcmask 261120
    %v52 = vsel %vm51, %v48, 0.0
    %53 = vadd.xlane.f32.xlu0 %v52
    %v54 = vpop.xlane.xlu0 %53
    %v55 = vrcp.pop 32.0
    %v56 = vmul.f32 %v54, %v55
    %v57 = vsub.f32 %v48, %v56
    %v58 = vmul.f32 %v57, %v57
    %v59 = vsel %vm51, %v58, 0.0
    %60 = vadd.xlane.f32.xlu0 %v59
    %v61 = vpop.xlane.xlu0 %60
    %v62 = vmul.f32 %v61, %v55
    %v63 = vadd.f32 %v62, 1e-05
    %v64 = vrsqrt.pop %v63
    %v65 = vmul.f32 %v57, %v64
    %v66 = vlaneseq
    %v67 = vshrl.u32 %v66, 7
    %v68 = vsub.s32 0, %v67
    %v69 = vrot.slane %v49, %v68
    %v70 = vmul.f32 %v65, %v69
    %v71 = vlaneseq
    %v72 = vshrl.u32 %v71, 7
    %v73 = vsub.s32 0, %v72
    %v74 = vrot.slane %v50, %v73
    %v75 = vadd.f32 %v70, %v74
    %v76 = vld [vmem:[%s2] sm:$0xff]
    %v77 = vld [vmem:[%s2 + $0x8] sm:$0xff]
    %v78 = vld [vmem:[%s2 + $0x10] sm:$0xff]
    %v79 = vld [vmem:[%s2 + $0x18] sm:$0xff]
    %v80 = vld [vmem:[#allocation6 + $0x6] sm:$0x1]
    %v81 = vlaneseq
    %v82 = vshrl.u32 %v81, 7
    %v83 = vsub.s32 0, %v82
    %v84 = vrot.slane %v80, %v83
    %v86 = vsel %vm51, %v75, 0
    %88 = vmatprep.subr.mxu0 0.0
    %89 = vmatpush1.msra.mxu0 %v76
    %90 = vmatprep.subr.mxu0 0.0
    %91 = vmatpush1.msra.mxu0 %v77
    %92 = vmatprep.subr.mxu0 0.0
    %93 = vmatpush1.msra.mxu0 %v78
    %94 = vmatprep.subr.mxu0 0.0
    %95 = vmatpush1.msra.mxu0 %v79
    %96 = vmatprep.subr.mxu0 0.0
    %97 = vmatpush1.msra.mxu0 0.0
    %98 = vmatprep.subr.mxu0 0.0
    %99 = vmatpush1.msra.mxu0 0.0
    %100 = vmatprep.subr.mxu0 0.0
    %101 = vmatpush1.msra.mxu0 0.0
    %102 = vmatprep.subr.mxu0 0.0
    %103 = vmatpush1.msra.mxu0 0.0
    %104 = vmatprep.subr.mxu0 0.0
    %105 = vmatpush1.msra.mxu0 0.0
    %106 = vmatprep.subr.mxu0 0.0
    %107 = vmatpush1.msra.mxu0 0.0
    %108 = vmatprep.subr.mxu0 0.0
    %109 = vmatpush1.msra.mxu0 0.0
    %110 = vmatprep.subr.mxu0 0.0
    %111 = vmatpush1.msra.mxu0 0.0
    %112 = vmatprep.subr.mxu0 0.0
    %113 = vmatpush1.msra.mxu0 0.0
    %114 = vmatprep.subr.mxu0 0.0
    %115 = vmatpush1.msra.mxu0 0.0
    %116 = vmatprep.subr.mxu0 0.0
    %117 = vmatpush1.msra.mxu0 0.0
    %118 = vmatprep.subr.mxu0 0.0
    %119 = vmatpush1.msra.mxu0 0.0
    %120 = vmatprep.subr.mxu0 0.0
    %121 = vmatpush1.msra.mxu0 0.0
    %122 = vmatprep.subr.mxu0 0.0
    %123 = vmatpush1.msra.mxu0 0.0
    %124 = vmatprep.subr.mxu0 0.0
    %125 = vmatpush1.msra.mxu0 0.0
    %126 = vmatprep.subr.mxu0 0.0
    %127 = vmatpush1.msra.mxu0 0.0
    %128 = vmatprep.subr.mxu0 0.0
    %129 = vmatpush1.msra.mxu0 0.0
    %130 = vmatprep.subr.mxu0 0.0
    %131 = vmatpush1.msra.mxu0 0.0
    %132 = vmatprep.subr.mxu0 0.0
    %133 = vmatpush1.msra.mxu0 0.0
    %134 = vmatprep.subr.mxu0 0.0
    %135 = vmatpush1.msra.mxu0 0.0
    %136 = vmatprep.subr.mxu0 0.0
    %137 = vmatpush1.msra.mxu0 0.0
    %138 = vmatprep.subr.mxu0 0.0
    %139 = vmatpush1.msra.mxu0 0.0
    %140 = vmatprep.subr.mxu0 0.0
    %141 = vmatpush1.msra.mxu0 0.0
    %142 = vmatprep.subr.mxu0 0.0
    %143 = vmatpush1.msra.mxu0 0.0
    %144 = vmatprep.subr.mxu0 0.0
    %145 = vmatpush1.msra.mxu0 0.0
    %146 = vmatprep.subr.mxu0 0.0
    %147 = vmatpush1.msra.mxu0 0.0
    %148 = vmatprep.subr.mxu0 0.0
    %149 = vmatpush1.msra.mxu0 0.0
    %150 = vmatprep.subr.mxu0 0.0
    %151 = vmatpush1.msra.mxu0 0.0
    %152 = vmatprep.mubr.f32.mxu0 0.0
    %153 = vmatmul.mubr.f32.gmra.mrb[0].mxu0 %v86
    %v154 = vpop.f32.mrb[0].mxu0
    %v155 = vadd.f32 %v84, %v154
    %v156 = vpop.f32.mrb[0].mxu0
    %157 = vdwg.mxu0
    %159 = vrot.lane.b32.xlu0 %v155, 96
    %v160 = vpop.permute.xlu0 %159
    %vm161 = vcmask 64512
    %v162 = vsel %vm161, %v155, 0
    %v164 = vsel %vm161, %v160, 0
    %166 = vmatprep.subr.mxu0 0.0
    %167 = vmatpush1.xpose.msra.mxu0 %v164
    %168 = vmatprep.subr.mxu0 0.0
    %169 = vmatpush1.xpose.msra.mxu0 0.0
    %170 = vmatprep.subr.mxu0 0.0
    %171 = vmatpush1.xpose.msra.mxu0 0.0
    %172 = vmatprep.subr.mxu0 0.0
    %173 = vmatpush1.xpose.msra.mxu0 0.0
    %174 = vmatprep.subr.mxu0 0.0
    %175 = vmatpush1.xpose.msra.mxu0 0.0
    %176 = vmatprep.subr.mxu0 0.0
    %177 = vmatpush1.xpose.msra.mxu0 0.0
    %178 = vmatprep.subr.mxu0 0.0
    %179 = vmatpush1.xpose.msra.mxu0 0.0
    %180 = vmatprep.subr.mxu0 0.0
    %181 = vmatpush1.xpose.msra.mxu0 0.0
    %182 = vmatprep.subr.mxu0 0.0
    %183 = vmatpush1.xpose.msra.mxu0 0.0
    %184 = vmatprep.subr.mxu0 0.0
    %185 = vmatpush1.xpose.msra.mxu0 0.0
    %186 = vmatprep.subr.mxu0 0.0
    %187 = vmatpush1.xpose.msra.mxu0 0.0
    %188 = vmatprep.subr.mxu0 0.0
    %189 = vmatpush1.xpose.msra.mxu0 0.0
    %190 = vmatprep.subr.mxu0 0.0
    %191 = vmatpush1.xpose.msra.mxu0 0.0
    %192 = vmatprep.subr.mxu0 0.0
    %193 = vmatpush1.xpose.msra.mxu0 0.0
    %194 = vmatprep.subr.mxu0 0.0
    %195 = vmatpush1.xpose.msra.mxu0 0.0
    %196 = vmatprep.subr.mxu0 0.0
    %197 = vmatpush1.xpose.msra.mxu0 0.0
    %198 = vmatprep.subr.mxu0 0.0
    %199 = vmatpush1.xpose.msra.mxu0 0.0
    %200 = vmatprep.subr.mxu0 0.0
    %201 = vmatpush1.xpose.msra.mxu0 0.0
    %202 = vmatprep.subr.mxu0 0.0
    %203 = vmatpush1.xpose.msra.mxu0 0.0
    %204 = vmatprep.subr.mxu0 0.0
    %205 = vmatpush1.xpose.msra.mxu0 0.0
    %206 = vmatprep.subr.mxu0 0.0
    %207 = vmatpush1.xpose.msra.mxu0 0.0
    %208 = vmatprep.subr.mxu0 0.0
    %209 = vmatpush1.xpose.msra.mxu0 0.0
    %210 = vmatprep.subr.mxu0 0.0
    %211 = vmatpush1.xpose.msra.mxu0 0.0
    %212 = vmatprep.subr.mxu0 0.0
    %213 = vmatpush1.xpose.msra.mxu0 0.0
    %214 = vmatprep.subr.mxu0 0.0
    %215 = vmatpush1.xpose.msra.mxu0 0.0
    %216 = vmatprep.subr.mxu0 0.0
    %217 = vmatpush1.xpose.msra.mxu0 0.0
    %218 = vmatprep.subr.mxu0 0.0
    %219 = vmatpush1.xpose.msra.mxu0 0.0
    %220 = vmatprep.subr.mxu0 0.0
    %221 = vmatpush1.xpose.msra.mxu0 0.0
    %222 = vmatprep.subr.mxu0 0.0
    %223 = vmatpush1.xpose.msra.mxu0 0.0
    %224 = vmatprep.subr.mxu0 0.0
    %225 = vmatpush1.xpose.msra.mxu0 0.0
    %226 = vmatprep.subr.mxu0 0.0
    %227 = vmatpush1.xpose.msra.mxu0 0.0
    %228 = vmatprep.subr.mxu0 0.0
    %229 = vmatpush1.xpose.msra.mxu0 0.0
    %230 = vmatprep.mubr.f32.mxu0 0.0
    %231 = vmatmul.mubr.f32.gmra.mrb[0].mxu0 %v162
    %v232 = vpop.f32.mrb[0].mxu0
    %v233 = vadd.f32 0.0, %v232
    %v234 = vpop.f32.mrb[0].mxu0
    %235 = vdwg.mxu0
    %v236 = vsel %vm161, %v233, -inf
    %237 = vmax.xlane.f32.xlu0 %v236
    %v238 = vpop.xlane.xlu0 %237
    %v239 = vsub.f32 %v233, %v238
    %v240 = vmul.f32 %v239, 1.442695
    %v241 = vpow.pop %v240
    %v242 = vsel %vm161, %v241, 0.0
    %243 = vadd.xlane.f32.xlu0 %v242
    %v244 = vpop.xlane.xlu0 %243
    %v245 = vrcp.pop %v244
    %v246 = vmul.f32 %v241, %v245
    %247 = vrot.lane.b32.xlu0 %v155, 64
    %v248 = vpop.permute.xlu0 %247
    %v251 = vsel %vm161, %v246, 0
    %253 = vmatprep.subr.mxu0 0.0
    %254 = vmatpush1.msra.mxu0 %v248
    %255 = vmatprep.subr.mxu0 0.0
    %256 = vmatpush1.msra.mxu0 0.0
    %257 = vmatprep.subr.mxu0 0.0
    %258 = vmatpush1.msra.mxu0 0.0
    %259 = vmatprep.subr.mxu0 0.0
    %260 = vmatpush1.msra.mxu0 0.0
    %261 = vmatprep.subr.mxu0 0.0
    %262 = vmatpush1.msra.mxu0 0.0
    %263 = vmatprep.subr.mxu0 0.0
    %264 = vmatpush1.msra.mxu0 0.0
    %265 = vmatprep.subr.mxu0 0.0
    %266 = vmatpush1.msra.mxu0 0.0
    %267 = vmatprep.subr.mxu0 0.0
    %268 = vmatpush1.msra.mxu0 0.0
    %269 = vmatprep.subr.mxu0 0.0
    %270 = vmatpush1.msra.mxu0 0.0
    %271 = vmatprep.subr.mxu0 0.0
    %272 = vmatpush1.msra.mxu0 0.0
    %273 = vmatprep.subr.mxu0 0.0
    %274 = vmatpush1.msra.mxu0 0.0
    %275 = vmatprep.subr.mxu0 0.0
    %276 = vmatpush1.msra.mxu0 0.0
    %277 = vmatprep.subr.mxu0 0.0
    %278 = vmatpush1.msra.mxu0 0.0
    %279 = vmatprep.subr.mxu0 0.0
    %280 = vmatpush1.msra.mxu0 0.0
    %281 = vmatprep.subr.mxu0 0.0
    %282 = vmatpush1.msra.mxu0 0.0
    %283 = vmatprep.subr.mxu0 0.0
    %284 = vmatpush1.msra.mxu0 0.0
    %285 = vmatprep.subr.mxu0 0.0
    %286 = vmatpush1.msra.mxu0 0.0
    %287 = vmatprep.subr.mxu0 0.0
    %288 = vmatpush1.msra.mxu0 0.0
    %289 = vmatprep.subr.mxu0 0.0
    %290 = vmatpush1.msra.mxu0 0.0
    %291 = vmatprep.subr.mxu0 0.0
    %292 = vmatpush1.msra.mxu0 0.0
    %293 = vmatprep.subr.mxu0 0.0
    %294 = vmatpush1.msra.mxu0 0.0
    %295 = vmatprep.subr.mxu0 0.0
    %296 = vmatpush1.msra.mxu0 0.0
    %297 = vmatprep.subr.mxu0 0.0
    %298 = vmatpush1.msra.mxu0 0.0
    %299 = vmatprep.subr.mxu0 0.0
    %300 = vmatpush1.msra.mxu0 0.0
    %301 = vmatprep.subr.mxu0 0.0
    %302 = vmatpush1.msra.mxu0 0.0
    %303 = vmatprep.subr.mxu0 0.0
    %304 = vmatpush1.msra.mxu0 0.0
    %305 = vmatprep.subr.mxu0 0.0
    %306 = vmatpush1.msra.mxu0 0.0
    %307 = vmatprep.subr.mxu0 0.0
    %308 = vmatpush1.msra.mxu0 0.0
    %309 = vmatprep.subr.mxu0 0.0
    %310 = vmatpush1.msra.mxu0 0.0
    %311 = vmatprep.subr.mxu0 0.0
    %312 = vmatpush1.msra.mxu0 0.0
    %313 = vmatprep.subr.mxu0 0.0
    %314 = vmatpush1.msra.mxu0 0.0
    %315 = vmatprep.subr.mxu0 0.0
    %316 = vmatpush1.msra.mxu0 0.0
    %317 = vmatprep.mubr.f32.mxu0 0.0
    %318 = vmatmul.mubr.f32.gmra.mrb[0].mxu0 %v251
    %v319 = vpop.f32.mrb[0].mxu0
    %v320 = vadd.f32 0.0, %v319
    %v321 = vpop.f32.mrb[0].mxu0
    %322 = vdwg.mxu0
    %323 = vst.msk [vmem:[#allocation2] sm:$0xff] %vm161, %v320
    %324 = vrot.lane.b32.xlu0 %v155, 120
    %v325 = vpop.permute.xlu0 %324
    %326 = vrot.lane.b32.xlu0 %v155, 88
    %v327 = vpop.permute.xlu0 %326
    %v328 = vsel %vm161, %v325, 0
    %v330 = vsel %vm161, %v327, 0
    %332 = vmatprep.subr.mxu0 0.0
    %333 = vmatpush1.xpose.msra.mxu0 %v330
    %334 = vmatprep.subr.mxu0 0.0
    %335 = vmatpush1.xpose.msra.mxu0 0.0
    %336 = vmatprep.subr.mxu0 0.0
    %337 = vmatpush1.xpose.msra.mxu0 0.0
    %338 = vmatprep.subr.mxu0 0.0
    %339 = vmatpush1.xpose.msra.mxu0 0.0
    %340 = vmatprep.subr.mxu0 0.0
    %341 = vmatpush1.xpose.msra.mxu0 0.0
    %342 = vmatprep.subr.mxu0 0.0
    %343 = vmatpush1.xpose.msra.mxu0 0.0
    %344 = vmatprep.subr.mxu0 0.0
    %345 = vmatpush1.xpose.msra.mxu0 0.0
    %346 = vmatprep.subr.mxu0 0.0
    %347 = vmatpush1.xpose.msra.mxu0 0.0
    %348 = vmatprep.subr.mxu0 0.0
    %349 = vmatpush1.xpose.msra.mxu0 0.0
    %350 = vmatprep.subr.mxu0 0.0
    %351 = vmatpush1.xpose.msra.mxu0 0.0
    %352 = vmatprep.subr.mxu0 0.0
    %353 = vmatpush1.xpose.msra.mxu0 0.0
    %354 = vmatprep.subr.mxu0 0.0
    %355 = vmatpush1.xpose.msra.mxu0 0.0
    %356 = vmatprep.subr.mxu0 0.0
    %357 = vmatpush1.xpose.msra.mxu0 0.0
    %358 = vmatprep.subr.mxu0 0.0
    %359 = vmatpush1.xpose.msra.mxu0 0.0
    %360 = vmatprep.subr.mxu0 0.0
    %361 = vmatpush1.xpose.msra.mxu0 0.0
    %362 = vmatprep.subr.mxu0 0.0
    %363 = vmatpush1.xpose.msra.mxu0 0.0
    %364 = vmatprep.subr.mxu0 0.0
    %365 = vmatpush1.xpose.msra.mxu0 0.0
    %366 = vmatprep.subr.mxu0 0.0
    %367 = vmatpush1.xpose.msra.mxu0 0.0
    %368 = vmatprep.subr.mxu0 0.0
    %369 = vmatpush1.xpose.msra.mxu0 0.0
    %370 = vmatprep.subr.mxu0 0.0
    %371 = vmatpush1.xpose.msra.mxu0 0.0
    %372 = vmatprep.subr.mxu0 0.0
    %373 = vmatpush1.xpose.msra.mxu0 0.0
    %374 = vmatprep.subr.mxu0 0.0
    %375 = vmatpush1.xpose.msra.mxu0 0.0
    %376 = vmatprep.subr.mxu0 0.0
    %377 = vmatpush1.xpose.msra.mxu0 0.0
    %378 = vmatprep.subr.mxu0 0.0
    %379 = vmatpush1.xpose.msra.mxu0 0.0
    %380 = vmatprep.subr.mxu0 0.0
    %381 = vmatpush1.xpose.msra.mxu0 0.0
    %382 = vmatprep.subr.mxu0 0.0
    %383 = vmatpush1.xpose.msra.mxu0 0.0
    %384 = vmatprep.subr.mxu0 0.0
    %385 = vmatpush1.xpose.msra.mxu0 0.0
    %386 = vmatprep.subr.mxu0 0.0
    %387 = vmatpush1.xpose.msra.mxu0 0.0
    %388 = vmatprep.subr.mxu0 0.0
    %389 = vmatpush1.xpose.msra.mxu0 0.0
    %390 = vmatprep.subr.mxu0 0.0
    %391 = vmatpush1.xpose.msra.mxu0 0.0
    %392 = vmatprep.subr.mxu0 0.0
    %393 = vmatpush1.xpose.msra.mxu0 0.0
    %394 = vmatprep.subr.mxu0 0.0
    %395 = vmatpush1.xpose.msra.mxu0 0.0
    %396 = vmatprep.mubr.f32.mxu0 0.0
    %397 = vmatmul.mubr.f32.gmra.mrb[0].mxu0 %v328
    %v398 = vpop.f32.mrb[0].mxu0
    %v399 = vadd.f32 0.0, %v398
    %v400 = vpop.f32.mrb[0].mxu0
    %401 = vdwg.mxu0
    %v402 = vsel %vm161, %v399, -inf
    %403 = vmax.xlane.f32.xlu0 %v402
    %v404 = vpop.xlane.xlu0 %403
    %v405 = vsub.f32 %v399, %v404
    %v406 = vmul.f32 %v405, 1.442695
    %v407 = vpow.pop %v406
    %v408 = vsel %vm161, %v407, 0.0
    %409 = vadd.xlane.f32.xlu0 %v408
    %v410 = vpop.xlane.xlu0 %409
    %v411 = vrcp.pop %v410
    %v412 = vmul.f32 %v407, %v411
    %413 = vrot.lane.b32.xlu0 %v155, 56
    %v414 = vpop.permute.xlu0 %413
    %v417 = vsel %vm161, %v412, 0
    %419 = vmatprep.subr.mxu0 0.0
    %420 = vmatpush1.msra.mxu0 %v414
    %421 = vmatprep.subr.mxu0 0.0
    %422 = vmatpush1.msra.mxu0 0.0
    %423 = vmatprep.subr.mxu0 0.0
    %424 = vmatpush1.msra.mxu0 0.0
    %425 = vmatprep.subr.mxu0 0.0
    %426 = vmatpush1.msra.mxu0 0.0
    %427 = vmatprep.subr.mxu0 0.0
    %428 = vmatpush1.msra.mxu0 0.0
    %429 = vmatprep.subr.mxu0 0.0
    %430 = vmatpush1.msra.mxu0 0.0
    %431 = vmatprep.subr.mxu0 0.0
    %432 = vmatpush1.msra.mxu0 0.0
    %433 = vmatprep.subr.mxu0 0.0
    %434 = vmatpush1.msra.mxu0 0.0
    %435 = vmatprep.subr.mxu0 0.0
    %436 = vmatpush1.msra.mxu0 0.0
    %437 = vmatprep.subr.mxu0 0.0
    %438 = vmatpush1.msra.mxu0 0.0
    %439 = vmatprep.subr.mxu0 0.0
    %440 = vmatpush1.msra.mxu0 0.0
    %441 = vmatprep.subr.mxu0 0.0
    %442 = vmatpush1.msra.mxu0 0.0
    %443 = vmatprep.subr.mxu0 0.0
    %444 = vmatpush1.msra.mxu0 0.0
    %445 = vmatprep.subr.mxu0 0.0
    %446 = vmatpush1.msra.mxu0 0.0
    %447 = vmatprep.subr.mxu0 0.0
    %448 = vmatpush1.msra.mxu0 0.0
    %449 = vmatprep.subr.mxu0 0.0
    %450 = vmatpush1.msra.mxu0 0.0
    %451 = vmatprep.subr.mxu0 0.0
    %452 = vmatpush1.msra.mxu0 0.0
    %453 = vmatprep.subr.mxu0 0.0
    %454 = vmatpush1.msra.mxu0 0.0
    %455 = vmatprep.subr.mxu0 0.0
    %456 = vmatpush1.msra.mxu0 0.0
    %457 = vmatprep.subr.mxu0 0.0
    %458 = vmatpush1.msra.mxu0 0.0
    %459 = vmatprep.subr.mxu0 0.0
    %460 = vmatpush1.msra.mxu0 0.0
    %461 = vmatprep.subr.mxu0 0.0
    %462 = vmatpush1.msra.mxu0 0.0
    %463 = vmatprep.subr.mxu0 0.0
    %464 = vmatpush1.msra.mxu0 0.0
    %465 = vmatprep.subr.mxu0 0.0
    %466 = vmatpush1.msra.mxu0 0.0
    %467 = vmatprep.subr.mxu0 0.0
    %468 = vmatpush1.msra.mxu0 0.0
    %469 = vmatprep.subr.mxu0 0.0
    %470 = vmatpush1.msra.mxu0 0.0
    %471 = vmatprep.subr.mxu0 0.0
    %472 = vmatpush1.msra.mxu0 0.0
    %473 = vmatprep.subr.mxu0 0.0
    %474 = vmatpush1.msra.mxu0 0.0
    %475 = vmatprep.subr.mxu0 0.0
    %476 = vmatpush1.msra.mxu0 0.0
    %477 = vmatprep.subr.mxu0 0.0
    %478 = vmatpush1.msra.mxu0 0.0
    %479 = vmatprep.subr.mxu0 0.0
    %480 = vmatpush1.msra.mxu0 0.0
    %481 = vmatprep.subr.mxu0 0.0
    %482 = vmatpush1.msra.mxu0 0.0
    %483 = vmatprep.mubr.f32.mxu0 0.0
    %484 = vmatmul.mubr.f32.gmra.mrb[0].mxu0 %v417
    %v485 = vpop.f32.mrb[0].mxu0
    %v486 = vadd.f32 0.0, %v485
    %v487 = vpop.f32.mrb[0].mxu0
    %488 = vdwg.mxu0
    %490 = vrot.lane.b32.xlu0 %v486, 8
    %v491 = vpop.permute.xlu0 %490
    %vm493 = vcmask 130112
    %494 = vst.msk [vmem:[#allocation2] sm:$0xff] %vm493, %v491
    %495 = vrot.lane.b32.xlu0 %v155, 112
    %v496 = vpop.permute.xlu0 %495
    %497 = vrot.lane.b32.xlu0 %v155, 80
    %v498 = vpop.permute.xlu0 %497
    %v499 = vsel %vm161, %v496, 0
    %v501 = vsel %vm161, %v498, 0
    %503 = vmatprep.subr.mxu0 0.0
    %504 = vmatpush1.xpose.msra.mxu0 %v501
    %505 = vmatprep.subr.mxu0 0.0
    %506 = vmatpush1.xpose.msra.mxu0 0.0
    %507 = vmatprep.subr.mxu0 0.0
    %508 = vmatpush1.xpose.msra.mxu0 0.0
    %509 = vmatprep.subr.mxu0 0.0
    %510 = vmatpush1.xpose.msra.mxu0 0.0
    %511 = vmatprep.subr.mxu0 0.0
    %512 = vmatpush1.xpose.msra.mxu0 0.0
    %513 = vmatprep.subr.mxu0 0.0
    %514 = vmatpush1.xpose.msra.mxu0 0.0
    %515 = vmatprep.subr.mxu0 0.0
    %516 = vmatpush1.xpose.msra.mxu0 0.0
    %517 = vmatprep.subr.mxu0 0.0
    %518 = vmatpush1.xpose.msra.mxu0 0.0
    %519 = vmatprep.subr.mxu0 0.0
    %520 = vmatpush1.xpose.msra.mxu0 0.0
    %521 = vmatprep.subr.mxu0 0.0
    %522 = vmatpush1.xpose.msra.mxu0 0.0
    %523 = vmatprep.subr.mxu0 0.0
    %524 = vmatpush1.xpose.msra.mxu0 0.0
    %525 = vmatprep.subr.mxu0 0.0
    %526 = vmatpush1.xpose.msra.mxu0 0.0
    %527 = vmatprep.subr.mxu0 0.0
    %528 = vmatpush1.xpose.msra.mxu0 0.0
    %529 = vmatprep.subr.mxu0 0.0
    %530 = vmatpush1.xpose.msra.mxu0 0.0
    %531 = vmatprep.subr.mxu0 0.0
    %532 = vmatpush1.xpose.msra.mxu0 0.0
    %533 = vmatprep.subr.mxu0 0.0
    %534 = vmatpush1.xpose.msra.mxu0 0.0
    %535 = vmatprep.subr.mxu0 0.0
    %536 = vmatpush1.xpose.msra.mxu0 0.0
    %537 = vmatprep.subr.mxu0 0.0
    %538 = vmatpush1.xpose.msra.mxu0 0.0
    %539 = vmatprep.subr.mxu0 0.0
    %540 = vmatpush1.xpose.msra.mxu0 0.0
    %541 = vmatprep.subr.mxu0 0.0
    %542 = vmatpush1.xpose.msra.mxu0 0.0
    %543 = vmatprep.subr.mxu0 0.0
    %544 = vmatpush1.xpose.msra.mxu0 0.0
    %545 = vmatprep.subr.mxu0 0.0
    %546 = vmatpush1.xpose.msra.mxu0 0.0
    %547 = vmatprep.subr.mxu0 0.0
    %548 = vmatpush1.xpose.msra.mxu0 0.0
    %549 = vmatprep.subr.mxu0 0.0
    %550 = vmatpush1.xpose.msra.mxu0 0.0
    %551 = vmatprep.subr.mxu0 0.0
    %552 = vmatpush1.xpose.msra.mxu0 0.0
    %553 = vmatprep.subr.mxu0 0.0
    %554 = vmatpush1.xpose.msra.mxu0 0.0
    %555 = vmatprep.subr.mxu0 0.0
    %556 = vmatpush1.xpose.msra.mxu0 0.0
    %557 = vmatprep.subr.mxu0 0.0
    %558 = vmatpush1.xpose.msra.mxu0 0.0
    %559 = vmatprep.subr.mxu0 0.0
    %560 = vmatpush1.xpose.msra.mxu0 0.0
    %561 = vmatprep.subr.mxu0 0.0
    %562 = vmatpush1.xpose.msra.mxu0 0.0
    %563 = vmatprep.subr.mxu0 0.0
    %564 = vmatpush1.xpose.msra.mxu0 0.0
    %565 = vmatprep.subr.mxu0 0.0
    %566 = vmatpush1.xpose.msra.mxu0 0.0
    %567 = vmatprep.mubr.f32.mxu0 0.0
    %568 = vmatmul.mubr.f32.gmra.mrb[0].mxu0 %v499
    %v569 = vpop.f32.mrb[0].mxu0
    %v570 = vadd.f32 0.0, %v569
    %v571 = vpop.f32.mrb[0].mxu0
    %572 = vdwg.mxu0
    %v573 = vsel %vm161, %v570, -inf
    %574 = vmax.xlane.f32.xlu0 %v573
    %v575 = vpop.xlane.xlu0 %574
    %v576 = vsub.f32 %v570, %v575
    %v577 = vmul.f32 %v576, 1.442695
    %v578 = vpow.pop %v577
    %v579 = vsel %vm161, %v578, 0.0
    %580 = vadd.xlane.f32.xlu0 %v579
    %v581 = vpop.xlane.xlu0 %580
    %v582 = vrcp.pop %v581
    %v583 = vmul.f32 %v578, %v582
    %584 = vrot.lane.b32.xlu0 %v155, 48
    %v585 = vpop.permute.xlu0 %584
    %v588 = vsel %vm161, %v583, 0
    %590 = vmatprep.subr.mxu0 0.0
    %591 = vmatpush1.msra.mxu0 %v585
    %592 = vmatprep.subr.mxu0 0.0
    %593 = vmatpush1.msra.mxu0 0.0
    %594 = vmatprep.subr.mxu0 0.0
    %595 = vmatpush1.msra.mxu0 0.0
    %596 = vmatprep.subr.mxu0 0.0
    %597 = vmatpush1.msra.mxu0 0.0
    %598 = vmatprep.subr.mxu0 0.0
    %599 = vmatpush1.msra.mxu0 0.0
    %600 = vmatprep.subr.mxu0 0.0
    %601 = vmatpush1.msra.mxu0 0.0
    %602 = vmatprep.subr.mxu0 0.0
    %603 = vmatpush1.msra.mxu0 0.0
    %604 = vmatprep.subr.mxu0 0.0
    %605 = vmatpush1.msra.mxu0 0.0
    %606 = vmatprep.subr.mxu0 0.0
    %607 = vmatpush1.msra.mxu0 0.0
    %608 = vmatprep.subr.mxu0 0.0
    %609 = vmatpush1.msra.mxu0 0.0
    %610 = vmatprep.subr.mxu0 0.0
    %611 = vmatpush1.msra.mxu0 0.0
    %612 = vmatprep.subr.mxu0 0.0
    %613 = vmatpush1.msra.mxu0 0.0
    %614 = vmatprep.subr.mxu0 0.0
    %615 = vmatpush1.msra.mxu0 0.0
    %616 = vmatprep.subr.mxu0 0.0
    %617 = vmatpush1.msra.mxu0 0.0
    %618 = vmatprep.subr.mxu0 0.0
    %619 = vmatpush1.msra.mxu0 0.0
    %620 = vmatprep.subr.mxu0 0.0
    %621 = vmatpush1.msra.mxu0 0.0
    %622 = vmatprep.subr.mxu0 0.0
    %623 = vmatpush1.msra.mxu0 0.0
    %624 = vmatprep.subr.mxu0 0.0
    %625 = vmatpush1.msra.mxu0 0.0
    %626 = vmatprep.subr.mxu0 0.0
    %627 = vmatpush1.msra.mxu0 0.0
    %628 = vmatprep.subr.mxu0 0.0
    %629 = vmatpush1.msra.mxu0 0.0
    %630 = vmatprep.subr.mxu0 0.0
    %631 = vmatpush1.msra.mxu0 0.0
    %632 = vmatprep.subr.mxu0 0.0
    %633 = vmatpush1.msra.mxu0 0.0
    %634 = vmatprep.subr.mxu0 0.0
    %635 = vmatpush1.msra.mxu0 0.0
    %636 = vmatprep.subr.mxu0 0.0
    %637 = vmatpush1.msra.mxu0 0.0
    %638 = vmatprep.subr.mxu0 0.0
    %639 = vmatpush1.msra.mxu0 0.0
    %640 = vmatprep.subr.mxu0 0.0
    %641 = vmatpush1.msra.mxu0 0.0
    %642 = vmatprep.subr.mxu0 0.0
    %643 = vmatpush1.msra.mxu0 0.0
    %644 = vmatprep.subr.mxu0 0.0
    %645 = vmatpush1.msra.mxu0 0.0
    %646 = vmatprep.subr.mxu0 0.0
    %647 = vmatpush1.msra.mxu0 0.0
    %648 = vmatprep.subr.mxu0 0.0
    %649 = vmatpush1.msra.mxu0 0.0
    %650 = vmatprep.subr.mxu0 0.0
    %651 = vmatpush1.msra.mxu0 0.0
    %652 = vmatprep.subr.mxu0 0.0
    %653 = vmatpush1.msra.mxu0 0.0
    %654 = vmatprep.mubr.f32.mxu0 0.0
    %655 = vmatmul.mubr.f32.gmra.mrb[0].mxu0 %v588
    %v656 = vpop.f32.mrb[0].mxu0
    %v657 = vadd.f32 0.0, %v656
    %v658 = vpop.f32.mrb[0].mxu0
    %659 = vdwg.mxu0
    %661 = vrot.lane.b32.xlu0 %v657, 16
    %v662 = vpop.permute.xlu0 %661
    %vm664 = vcmask 195712
    %665 = vst.msk [vmem:[#allocation2] sm:$0xff] %vm664, %v662
    %666 = vrot.lane.b32.xlu0 %v155, 104
    %v667 = vpop.permute.xlu0 %666
    %668 = vrot.lane.b32.xlu0 %v155, 72
    %v669 = vpop.permute.xlu0 %668
    %v670 = vsel %vm161, %v667, 0
    %v672 = vsel %vm161, %v669, 0
    %674 = vmatprep.subr.mxu0 0.0
    %675 = vmatpush1.xpose.msra.mxu0 %v672
    %676 = vmatprep.subr.mxu0 0.0
    %677 = vmatpush1.xpose.msra.mxu0 0.0
    %678 = vmatprep.subr.mxu0 0.0
    %679 = vmatpush1.xpose.msra.mxu0 0.0
    %680 = vmatprep.subr.mxu0 0.0
    %681 = vmatpush1.xpose.msra.mxu0 0.0
    %682 = vmatprep.subr.mxu0 0.0
    %683 = vmatpush1.xpose.msra.mxu0 0.0
    %684 = vmatprep.subr.mxu0 0.0
    %685 = vmatpush1.xpose.msra.mxu0 0.0
    %686 = vmatprep.subr.mxu0 0.0
    %687 = vmatpush1.xpose.msra.mxu0 0.0
    %688 = vmatprep.subr.mxu0 0.0
    %689 = vmatpush1.xpose.msra.mxu0 0.0
    %690 = vmatprep.subr.mxu0 0.0
    %691 = vmatpush1.xpose.msra.mxu0 0.0
    %692 = vmatprep.subr.mxu0 0.0
    %693 = vmatpush1.xpose.msra.mxu0 0.0
    %694 = vmatprep.subr.mxu0 0.0
    %695 = vmatpush1.xpose.msra.mxu0 0.0
    %696 = vmatprep.subr.mxu0 0.0
    %697 = vmatpush1.xpose.msra.mxu0 0.0
    %698 = vmatprep.subr.mxu0 0.0
    %699 = vmatpush1.xpose.msra.mxu0 0.0
    %700 = vmatprep.subr.mxu0 0.0
    %701 = vmatpush1.xpose.msra.mxu0 0.0
    %702 = vmatprep.subr.mxu0 0.0
    %703 = vmatpush1.xpose.msra.mxu0 0.0
    %704 = vmatprep.subr.mxu0 0.0
    %705 = vmatpush1.xpose.msra.mxu0 0.0
    %706 = vmatprep.subr.mxu0 0.0
    %707 = vmatpush1.xpose.msra.mxu0 0.0
    %708 = vmatprep.subr.mxu0 0.0
    %709 = vmatpush1.xpose.msra.mxu0 0.0
    %710 = vmatprep.subr.mxu0 0.0
    %711 = vmatpush1.xpose.msra.mxu0 0.0
    %712 = vmatprep.subr.mxu0 0.0
    %713 = vmatpush1.xpose.msra.mxu0 0.0
    %714 = vmatprep.subr.mxu0 0.0
    %715 = vmatpush1.xpose.msra.mxu0 0.0
    %716 = vmatprep.subr.mxu0 0.0
    %717 = vmatpush1.xpose.msra.mxu0 0.0
    %718 = vmatprep.subr.mxu0 0.0
    %719 = vmatpush1.xpose.msra.mxu0 0.0
    %720 = vmatprep.subr.mxu0 0.0
    %721 = vmatpush1.xpose.msra.mxu0 0.0
    %722 = vmatprep.subr.mxu0 0.0
    %723 = vmatpush1.xpose.msra.mxu0 0.0
    %724 = vmatprep.subr.mxu0 0.0
    %725 = vmatpush1.xpose.msra.mxu0 0.0
    %726 = vmatprep.subr.mxu0 0.0
    %727 = vmatpush1.xpose.msra.mxu0 0.0
    %728 = vmatprep.subr.mxu0 0.0
    %729 = vmatpush1.xpose.msra.mxu0 0.0
    %730 = vmatprep.subr.mxu0 0.0
    %731 = vmatpush1.xpose.msra.mxu0 0.0
    %732 = vmatprep.subr.mxu0 0.0
    %733 = vmatpush1.xpose.msra.mxu0 0.0
    %734 = vmatprep.subr.mxu0 0.0
    %735 = vmatpush1.xpose.msra.mxu0 0.0
    %736 = vmatprep.subr.mxu0 0.0
    %737 = vmatpush1.xpose.msra.mxu0 0.0
    %738 = vmatprep.mubr.f32.mxu0 0.0
    %739 = vmatmul.mubr.f32.gmra.mrb[0].mxu0 %v670
    %v740 = vpop.f32.mrb[0].mxu0
    %v741 = vadd.f32 0.0, %v740
    %v742 = vpop.f32.mrb[0].mxu0
    %743 = vdwg.mxu0
    %v744 = vsel %vm161, %v741, -inf
    %745 = vmax.xlane.f32.xlu0 %v744
    %v746 = vpop.xlane.xlu0 %745
    %v747 = vsub.f32 %v741, %v746
    %v748 = vmul.f32 %v747, 1.442695
    %v749 = vpow.pop %v748
    %v750 = vsel %vm161, %v749, 0.0
    %751 = vadd.xlane.f32.xlu0 %v750
    %v752 = vpop.xlane.xlu0 %751
    %v753 = vrcp.pop %v752
    %v754 = vmul.f32 %v749, %v753
    %755 = vrot.lane.b32.xlu0 %v155, 40
    %v756 = vpop.permute.xlu0 %755
    %v759 = vsel %vm161, %v754, 0
    %761 = vmatprep.subr.mxu0 0.0
    %762 = vmatpush1.msra.mxu0 %v756
    %763 = vmatprep.subr.mxu0 0.0
    %764 = vmatpush1.msra.mxu0 0.0
    %765 = vmatprep.subr.mxu0 0.0
    %766 = vmatpush1.msra.mxu0 0.0
    %767 = vmatprep.subr.mxu0 0.0
    %768 = vmatpush1.msra.mxu0 0.0
    %769 = vmatprep.subr.mxu0 0.0
    %770 = vmatpush1.msra.mxu0 0.0
    %771 = vmatprep.subr.mxu0 0.0
    %772 = vmatpush1.msra.mxu0 0.0
    %773 = vmatprep.subr.mxu0 0.0
    %774 = vmatpush1.msra.mxu0 0.0
    %775 = vmatprep.subr.mxu0 0.0
    %776 = vmatpush1.msra.mxu0 0.0
    %777 = vmatprep.subr.mxu0 0.0
    %778 = vmatpush1.msra.mxu0 0.0
    %779 = vmatprep.subr.mxu0 0.0
    %780 = vmatpush1.msra.mxu0 0.0
    %781 = vmatprep.subr.mxu0 0.0
    %782 = vmatpush1.msra.mxu0 0.0
    %783 = vmatprep.subr.mxu0 0.0
    %784 = vmatpush1.msra.mxu0 0.0
    %785 = vmatprep.subr.mxu0 0.0
    %786 = vmatpush1.msra.mxu0 0.0
    %787 = vmatprep.subr.mxu0 0.0
    %788 = vmatpush1.msra.mxu0 0.0
    %789 = vmatprep.subr.mxu0 0.0
    %790 = vmatpush1.msra.mxu0 0.0
    %791 = vmatprep.subr.mxu0 0.0
    %792 = vmatpush1.msra.mxu0 0.0
    %793 = vmatprep.subr.mxu0 0.0
    %794 = vmatpush1.msra.mxu0 0.0
    %795 = vmatprep.subr.mxu0 0.0
    %796 = vmatpush1.msra.mxu0 0.0
    %797 = vmatprep.subr.mxu0 0.0
    %798 = vmatpush1.msra.mxu0 0.0
    %799 = vmatprep.subr.mxu0 0.0
    %800 = vmatpush1.msra.mxu0 0.0
    %801 = vmatprep.subr.mxu0 0.0
    %802 = vmatpush1.msra.mxu0 0.0
    %803 = vmatprep.subr.mxu0 0.0
    %804 = vmatpush1.msra.mxu0 0.0
    %805 = vmatprep.subr.mxu0 0.0
    %806 = vmatpush1.msra.mxu0 0.0
    %807 = vmatprep.subr.mxu0 0.0
    %808 = vmatpush1.msra.mxu0 0.0
    %809 = vmatprep.subr.mxu0 0.0
    %810 = vmatpush1.msra.mxu0 0.0
    %811 = vmatprep.subr.mxu0 0.0
    %812 = vmatpush1.msra.mxu0 0.0
    %813 = vmatprep.subr.mxu0 0.0
    %814 = vmatpush1.msra.mxu0 0.0
    %815 = vmatprep.subr.mxu0 0.0
    %816 = vmatpush1.msra.mxu0 0.0
    %817 = vmatprep.subr.mxu0 0.0
    %818 = vmatpush1.msra.mxu0 0.0
    %819 = vmatprep.subr.mxu0 0.0
    %820 = vmatpush1.msra.mxu0 0.0
    %821 = vmatprep.subr.mxu0 0.0
    %822 = vmatpush1.msra.mxu0 0.0
    %823 = vmatprep.subr.mxu0 0.0
    %824 = vmatpush1.msra.mxu0 0.0
    %825 = vmatprep.mubr.f32.mxu0 0.0
    %826 = vmatmul.mubr.f32.gmra.mrb[0].mxu0 %v759
    %v827 = vpop.f32.mrb[0].mxu0
    %v828 = vadd.f32 0.0, %v827
    %v829 = vpop.f32.mrb[0].mxu0
    %830 = vdwg.mxu0
    %832 = vrot.lane.b32.xlu0 %v828, 24
    %v833 = vpop.permute.xlu0 %832
    %vm835 = vcmask 261312
    %836 = vst.msk [vmem:[#allocation2] sm:$0xff] %vm835, %v833
    %v837 = vld [vmem:[#allocation2] sm:$0xff]
    %v838 = vld [vmem:[%s3] sm:$0xff]
    %v839 = vld [vmem:[%s3 + $0x8] sm:$0xff]
    %v840 = vld [vmem:[%s3 + $0x10] sm:$0xff]
    %v841 = vld [vmem:[%s3 + $0x18] sm:$0xff]
    %v842 = vld [vmem:[#allocation6 + $0x4] sm:$0x1]
    %v843 = vlaneseq
    %v844 = vshrl.u32 %v843, 7
    %v845 = vsub.s32 0, %v844
    %v846 = vrot.slane %v842, %v845
    %v848 = vsel %vm51, %v837, 0
    %850 = vmatprep.subr.mxu0 0.0
    %851 = vmatpush1.msra.mxu0 %v838
    %852 = vmatprep.subr.mxu0 0.0
    %853 = vmatpush1.msra.mxu0 %v839
    %854 = vmatprep.subr.mxu0 0.0
    %855 = vmatpush1.msra.mxu0 %v840
    %856 = vmatprep.subr.mxu0 0.0
    %857 = vmatpush1.msra.mxu0 %v841
    %858 = vmatprep.subr.mxu0 0.0
    %859 = vmatpush1.msra.mxu0 0.0
    %860 = vmatprep.subr.mxu0 0.0
    %861 = vmatpush1.msra.mxu0 0.0
    %862 = vmatprep.subr.mxu0 0.0
    %863 = vmatpush1.msra.mxu0 0.0
    %864 = vmatprep.subr.mxu0 0.0
    %865 = vmatpush1.msra.mxu0 0.0
    %866 = vmatprep.subr.mxu0 0.0
    %867 = vmatpush1.msra.mxu0 0.0
    %868 = vmatprep.subr.mxu0 0.0
    %869 = vmatpush1.msra.mxu0 0.0
    %870 = vmatprep.subr.mxu0 0.0
    %871 = vmatpush1.msra.mxu0 0.0
    %872 = vmatprep.subr.mxu0 0.0
    %873 = vmatpush1.msra.mxu0 0.0
    %874 = vmatprep.subr.mxu0 0.0
    %875 = vmatpush1.msra.mxu0 0.0
    %876 = vmatprep.subr.mxu0 0.0
    %877 = vmatpush1.msra.mxu0 0.0
    %878 = vmatprep.subr.mxu0 0.0
    %879 = vmatpush1.msra.mxu0 0.0
    %880 = vmatprep.subr.mxu0 0.0
    %881 = vmatpush1.msra.mxu0 0.0
    %882 = vmatprep.subr.mxu0 0.0
    %883 = vmatpush1.msra.mxu0 0.0
    %884 = vmatprep.subr.mxu0 0.0
    %885 = vmatpush1.msra.mxu0 0.0
    %886 = vmatprep.subr.mxu0 0.0
    %887 = vmatpush1.msra.mxu0 0.0
    %888 = vmatprep.subr.mxu0 0.0
    %889 = vmatpush1.msra.mxu0 0.0
    %890 = vmatprep.subr.mxu0 0.0
    %891 = vmatpush1.msra.mxu0 0.0
    %892 = vmatprep.subr.mxu0 0.0
    %893 = vmatpush1.msra.mxu0 0.0
    %894 = vmatprep.subr.mxu0 0.0
    %895 = vmatpush1.msra.mxu0 0.0
    %896 = vmatprep.subr.mxu0 0.0
    %897 = vmatpush1.msra.mxu0 0.0
    %898 = vmatprep.subr.mxu0 0.0
    %899 = vmatpush1.msra.mxu0 0.0
    %900 = vmatprep.subr.mxu0 0.0
    %901 = vmatpush1.msra.mxu0 0.0
    %902 = vmatprep.subr.mxu0 0.0
    %903 = vmatpush1.msra.mxu0 0.0
    %904 = vmatprep.subr.mxu0 0.0
    %905 = vmatpush1.msra.mxu0 0.0
    %906 = vmatprep.subr.mxu0 0.0
    %907 = vmatpush1.msra.mxu0 0.0
    %908 = vmatprep.subr.mxu0 0.0
    %909 = vmatpush1.msra.mxu0 0.0
    %910 = vmatprep.subr.mxu0 0.0
    %911 = vmatpush1.msra.mxu0 0.0
    %912 = vmatprep.subr.mxu0 0.0
    %913 = vmatpush1.msra.mxu0 0.0
    %914 = vmatprep.mubr.f32.mxu0 0.0
    %915 = vmatmul.mubr.f32.gmra.mrb[0].mxu0 %v848
    %v916 = vpop.f32.mrb[0].mxu0
    %v917 = vadd.f32 %v846, %v916
    %v918 = vpop.f32.mrb[0].mxu0
    %919 = vdwg.mxu0
    %v920 = vadd.f32 %v48, %v917
    %v921 = vld [vmem:[#allocation6 + $0x2] sm:$0x1]
    %v922 = vld [vmem:[#allocation6 + $0x3] sm:$0x1]
    %v923 = vsel %vm51, %v920, 0.0
    %924 = vadd.xlane.f32.xlu0 %v923
    %v925 = vpop.xlane.xlu0 %924
    %v926 = vmul.f32 %v925, %v55
    %v927 = vsub.f32 %v920, %v926
    %v928 = vmul.f32 %v927, %v927
    %v929 = vsel %vm51, %v928, 0.0
    %930 = vadd.xlane.f32.xlu0 %v929
    %v931 = vpop.xlane.xlu0 %930
    %v932 = vmul.f32 %v931, %v55
    %v933 = vadd.f32 %v932, 1e-05
    %v934 = vrsqrt.pop %v933
    %v935 = vmul.f32 %v927, %v934
    %v936 = vlaneseq
    %v937 = vshrl.u32 %v936, 7
    %v938 = vsub.s32 0, %v937
    %v939 = vrot.slane %v921, %v938
    %v940 = vmul.f32 %v935, %v939
    %v941 = vlaneseq
    %v942 = vshrl.u32 %v941, 7
    %v943 = vsub.s32 0, %v942
    %v944 = vrot.slane %v922, %v943
    %v945 = vadd.f32 %v940, %v944
    %v946 = vld [vmem:[%s4] sm:$0xff]
    %v947 = vld [vmem:[%s4 + $0x8] sm:$0xff]
    %v948 = vld [vmem:[%s4 + $0x10] sm:$0xff]
    %v949 = vld [vmem:[%s4 + $0x18] sm:$0xff]
    %v950 = vld [vmem:[#allocation6 + $0x7] sm:$0x1]
    %v951 = vlaneseq
    %v952 = vshrl.u32 %v951, 7
    %v953 = vsub.s32 0, %v952
    %v954 = vrot.slane %v950, %v953
    %v956 = vsel %vm51, %v945, 0
    %958 = vmatprep.subr.mxu0 0.0
    %959 = vmatpush1.msra.mxu0 %v946
    %960 = vmatprep.subr.mxu0 0.0
    %961 = vmatpush1.msra.mxu0 %v947
    %962 = vmatprep.subr.mxu0 0.0
    %963 = vmatpush1.msra.mxu0 %v948
    %964 = vmatprep.subr.mxu0 0.0
    %965 = vmatpush1.msra.mxu0 %v949
    %966 = vmatprep.subr.mxu0 0.0
    %967 = vmatpush1.msra.mxu0 0.0
    %968 = vmatprep.subr.mxu0 0.0
    %969 = vmatpush1.msra.mxu0 0.0
    %970 = vmatprep.subr.mxu0 0.0
    %971 = vmatpush1.msra.mxu0 0.0
    %972 = vmatprep.subr.mxu0 0.0
    %973 = vmatpush1.msra.mxu0 0.0
    %974 = vmatprep.subr.mxu0 0.0
    %975 = vmatpush1.msra.mxu0 0.0
    %976 = vmatprep.subr.mxu0 0.0
    %977 = vmatpush1.msra.mxu0 0.0
    %978 = vmatprep.subr.mxu0 0.0
    %979 = vmatpush1.msra.mxu0 0.0
    %980 = vmatprep.subr.mxu0 0.0
    %981 = vmatpush1.msra.mxu0 0.0
    %982 = vmatprep.subr.mxu0 0.0
    %983 = vmatpush1.msra.mxu0 0.0
    %984 = vmatprep.subr.mxu0 0.0
    %985 = vmatpush1.msra.mxu0 0.0
    %986 = vmatprep.subr.mxu0 0.0
    %987 = vmatpush1.msra.mxu0 0.0
    %988 = vmatprep.subr.mxu0 0.0
    %989 = vmatpush1.msra.mxu0 0.0
    %990 = vmatprep.subr.mxu0 0.0
    %991 = vmatpush1.msra.mxu0 0.0
    %992 = vmatprep.subr.mxu0 0.0
    %993 = vmatpush1.msra.mxu0 0.0
    %994 = vmatprep.subr.mxu0 0.0
    %995 = vmatpush1.msra.mxu0 0.0
    %996 = vmatprep.subr.mxu0 0.0
    %997 = vmatpush1.msra.mxu0 0.0
    %998 = vmatprep.subr.mxu0 0.0
    %999 = vmatpush1.msra.mxu0 0.0
    %1000 = vmatprep.subr.mxu0 0.0
    %1001 = vmatpush1.msra.mxu0 0.0
    %1002 = vmatprep.subr.mxu0 0.0
    %1003 = vmatpush1.msra.mxu0 0.0
    %1004 = vmatprep.subr.mxu0 0.0
    %1005 = vmatpush1.msra.mxu0 0.0
    %1006 = vmatprep.subr.mxu0 0.0
    %1007 = vmatpush1.msra.mxu0 0.0
    %1008 = vmatprep.subr.mxu0 0.0
    %1009 = vmatpush1.msra.mxu0 0.0
    %1010 = vmatprep.subr.mxu0 0.0
    %1011 = vmatpush1.msra.mxu0 0.0
    %1012 = vmatprep.subr.mxu0 0.0
    %1013 = vmatpush1.msra.mxu0 0.0
    %1014 = vmatprep.subr.mxu0 0.0
    %1015 = vmatpush1.msra.mxu0 0.0
    %1016 = vmatprep.subr.mxu0 0.0
    %1017 = vmatpush1.msra.mxu0 0.0
    %1018 = vmatprep.subr.mxu0 0.0
    %1019 = vmatpush1.msra.mxu0 0.0
    %1020 = vmatprep.subr.mxu0 0.0
    %1021 = vmatpush1.msra.mxu0 0.0
    %1022 = vmatprep.mubr.f32.mxu0 0.0
    %1023 = vmatmul.mubr.f32.gmra.mrb[0].mxu0 %v956
    %v1024 = vpop.f32.mrb[0].mxu0
    %v1025 = vadd.f32 %v954, %v1024
    %v1026 = vpop.f32.mrb[0].mxu0
    %1027 = vdwg.mxu0
    %v1028 = vmul.f32 %v1025, 0.5
    %v1029 = vmul.f32 %v1025, 0.70710677
    %v1030 = verf.f32.pop %v1029
    %v1031 = vadd.f32 %v1030, 1.0
    %v1032 = vmul.f32 %v1028, %v1031
    %v1033 = vld [vmem:[%s5] sm:$0xff]
    %v1034 = vld [vmem:[%s5 + $0x8] sm:$0xff]
    %v1035 = vld [vmem:[%s5 + $0x10] sm:$0xff]
    %v1036 = vld [vmem:[%s5 + $0x18] sm:$0xff]
    %v1037 = vld [vmem:[%s5 + $0x20] sm:$0xff]
    %v1038 = vld [vmem:[%s5 + $0x28] sm:$0xff]
    %v1039 = vld [vmem:[%s5 + $0x30] sm:$0xff]
    %v1040 = vld [vmem:[%s5 + $0x38] sm:$0xff]
    %v1041 = vld [vmem:[#allocation6 + $0x5] sm:$0x1]
    %v1042 = vlaneseq
    %v1043 = vshrl.u32 %v1042, 7
    %v1044 = vsub.s32 0, %v1043
    %v1045 = vrot.slane %v1041, %v1044
    %vm1046 = vcmask 523264
    %v1048 = vsel %vm1046, %v1032, 0
    %1050 = vmatprep.subr.mxu0 0.0
    %1051 = vmatpush1.msra.mxu0 %v1033
    %1052 = vmatprep.subr.mxu0 0.0
    %1053 = vmatpush1.msra.mxu0 %v1034
    %1054 = vmatprep.subr.mxu0 0.0
    %1055 = vmatpush1.msra.mxu0 %v1035
    %1056 = vmatprep.subr.mxu0 0.0
    %1057 = vmatpush1.msra.mxu0 %v1036
    %1058 = vmatprep.subr.mxu0 0.0
    %1059 = vmatpush1.msra.mxu0 %v1037
    %1060 = vmatprep.subr.mxu0 0.0
    %1061 = vmatpush1.msra.mxu0 %v1038
    %1062 = vmatprep.subr.mxu0 0.0
    %1063 = vmatpush1.msra.mxu0 %v1039
    %1064 = vmatprep.subr.mxu0 0.0
    %1065 = vmatpush1.msra.mxu0 %v1040
    %1066 = vmatprep.subr.mxu0 0.0
    %1067 = vmatpush1.msra.mxu0 0.0
    %1068 = vmatprep.subr.mxu0 0.0
    %1069 = vmatpush1.msra.mxu0 0.0
    %1070 = vmatprep.subr.mxu0 0.0
    %1071 = vmatpush1.msra.mxu0 0.0
    %1072 = vmatprep.subr.mxu0 0.0
    %1073 = vmatpush1.msra.mxu0 0.0
    %1074 = vmatprep.subr.mxu0 0.0
    %1075 = vmatpush1.msra.mxu0 0.0
    %1076 = vmatprep.subr.mxu0 0.0
    %1077 = vmatpush1.msra.mxu0 0.0
    %1078 = vmatprep.subr.mxu0 0.0
    %1079 = vmatpush1.msra.mxu0 0.0
    %1080 = vmatprep.subr.mxu0 0.0
    %1081 = vmatpush1.msra.mxu0 0.0
    %1082 = vmatprep.subr.mxu0 0.0
    %1083 = vmatpush1.msra.mxu0 0.0
    %1084 = vmatprep.subr.mxu0 0.0
    %1085 = vmatpush1.msra.mxu0 0.0
    %1086 = vmatprep.subr.mxu0 0.0
    %1087 = vmatpush1.msra.mxu0 0.0
    %1088 = vmatprep.subr.mxu0 0.0
    %1089 = vmatpush1.msra.mxu0 0.0
    %1090 = vmatprep.subr.mxu0 0.0
    %1091 = vmatpush1.msra.mxu0 0.0
    %1092 = vmatprep.subr.mxu0 0.0
    %1093 = vmatpush1.msra.mxu0 0.0
    %1094 = vmatprep.subr.mxu0 0.0
    %1095 = vmatpush1.msra.mxu0 0.0
    %1096 = vmatprep.subr.mxu0 0.0
    %1097 = vmatpush1.msra.mxu0 0.0
    %1098 = vmatprep.subr.mxu0 0.0
    %1099 = vmatpush1.msra.mxu0 0.0
    %1100 = vmatprep.subr.mxu0 0.0
    %1101 = vmatpush1.msra.mxu0 0.0
    %1102 = vmatprep.subr.mxu0 0.0
    %1103 = vmatpush1.msra.mxu0 0.0
    %1104 = vmatprep.subr.mxu0 0.0
    %1105 = vmatpush1.msra.mxu0 0.0
    %1106 = vmatprep.subr.mxu0 0.0
    %1107 = vmatpush1.msra.mxu0 0.0
    %1108 = vmatprep.subr.mxu0 0.0
    %1109 = vmatpush1.msra.mxu0 0.0
    %1110 = vmatprep.subr.mxu0 0.0
    %1111 = vmatpush1.msra.mxu0 0.0
    %1112 = vmatprep.subr.mxu0 0.0
    %1113 = vmatpush1.msra.mxu0 0.0
    %1114 = vmatprep.mubr.f32.mxu0 0.0
    %1115 = vmatmul.mubr.f32.gmra.mrb[0].mxu0 %v1048
    %v1116 = vpop.f32.mrb[0].mxu0
    %v1117 = vadd.f32 %v1045, %v1116
    %v1118 = vpop.f32.mrb[0].mxu0
    %1119 = vdwg.mxu0
    %v1120 = vadd.f32 %v920, %v1117
    %1121 = vst.msk [vmem:[#allocation8] sm:$0xff] %vm51, %v1120
    // Predicated region
    $region34: #{tpu_custom_call.1} parent=1 // pred_check
      _
    $region35: #{tpu_custom_call.1} parent=1 // pred_check_branch
      %1123 = sbr.rel (0) target = $region37
    $region36: #{tpu_custom_call.1} parent=1 // pred_region
      %s1125 = ssub.s32 128, 128
      %1126 = vsyncadd [#allocation5], %s1125
      %s1128 = sshll.u32 [#allocation8], 4
      %s1129 = int_to_ptr.vmem [resolvable:$true] %s1128
      %1131 = dma.vmem_to_hbm [thread:$0]  %s1129, 128, %s6, [#allocation5]
    $region37: #{tpu_custom_call.1} parent=1 // pred_fallthru
      _
    // Predicated region
    $region38: #{tpu_custom_call.1} parent=1 // pred_check
      _
    $region39: #{tpu_custom_call.1} parent=1 // pred_check_branch
      %1133 = sbr.rel (0) target = $region41
    $region40: #{tpu_custom_call.1} parent=1 // pred_region
      %1134 = dma.done [#allocation5], 128
    $region41: #{tpu_custom_call.1} parent=1 // pred_fallthru
      _
    %1135 = vsyncpa [#allocation4], 1
    %1136 = vsyncpa [#allocation7], 1
    %1137 = vsyncpa [#allocation5], 1

</llo_original>
